<compile_context>
chip_gen: v7x
topology: tpu7x:2x2x1
jax: 0.10.0
libtpu: 0.0.40
codegen_flags: <defaults>
</compile_context>

<pallas_src>
import functools

import jax
import jax.numpy as jnp
from jax import lax
from jax.experimental import pallas as pl
from jax.experimental.pallas import tpu as pltpu

EPS = 1e-5


def _block_kernel(x_ref, wb1_ref, wb2_ref, g1_ref, be1_ref, g2_ref, be2_ref,
                  o_ref, *, n, h, w, c):
    # x_ref   : (N*H, W*C) input activations, f32, lane-dense layout
    # wb*_ref : (3, W*C, W*C) banded conv weights (one band per kh tap)
    # g*/be*  : (1, W*C) batchnorm gamma / beta, pre-tiled to the lane layout
    # o_ref   : (N*H, W*C) output
    nh = n * h
    wc = w * c
    inv_m = 1.0 / float(n * h * w)
    f32 = jnp.float32

    # ---- constant helper matrices (built on the VPU from 2-D iotas) --------
    # Row-shift matrices: fold the kh = 0 / 2 row offsets *and* the H-edge
    # zero padding into small MXU matmuls (no strided slices, no relayouts).
    r_o = lax.broadcasted_iota(jnp.int32, (nh, nh), 0)      # output row index
    r_s = lax.broadcasted_iota(jnp.int32, (nh, nh), 1)      # source row index
    hh = r_o % h
    s_up = jnp.where((r_s == r_o - 1) & (hh >= 1), 1.0, 0.0)       # row r-1
    s_dn = jnp.where((r_s == r_o + 1) & (hh <= h - 2), 1.0, 0.0)   # row r+1

    # Channel projection matrix: proj[i, j] = 1 iff lane i and lane j hold the
    # same channel.  (Y @ proj) sums each channel's W lane-groups and leaves
    # the result broadcast back in the lane layout -> BN stats stay on the MXU.
    li = lax.broadcasted_iota(jnp.int32, (wc, wc), 0)
    lj = lax.broadcasted_iota(jnp.int32, (wc, wc), 1)
    proj = jnp.where(li % c == lj % c, 1.0, 0.0)

    def conv3x3(a, wb_ref):
        # y[r] = a[r-1] @ wb[0] + a[r] @ wb[1] + a[r+1] @ wb[2]
        # (kw taps + W zero-padding already folded into each band matrix)
        a_up = jnp.dot(s_up, a, preferred_element_type=f32)
        a_dn = jnp.dot(s_dn, a, preferred_element_type=f32)
        y = jnp.dot(a, wb_ref[1], preferred_element_type=f32)
        y = y + jnp.dot(a_up, wb_ref[0], preferred_element_type=f32)
        y = y + jnp.dot(a_dn, wb_ref[2], preferred_element_type=f32)
        return y

    def batchnorm(y, g_ref, b_ref):
        # Single-pass training-mode BN: var = E[x^2] - mean^2 (f32 accumulate).
        sum_l = jnp.sum(jnp.dot(y, proj, preferred_element_type=f32),
                        axis=0, keepdims=True)               # (1, W*C)
        sq_l = jnp.sum(jnp.dot(y * y, proj, preferred_element_type=f32),
                       axis=0, keepdims=True)                # (1, W*C)
        mean_l = sum_l * inv_m
        var_l = sq_l * inv_m - mean_l * mean_l
        scale_l = g_ref[...] * lax.rsqrt(var_l + EPS)
        shift_l = b_ref[...] - mean_l * scale_l
        return y * scale_l + shift_l

    x = x_ref[...]

    # conv1 -> bn1 -> relu   (conv bias omitted: cancelled by BN mean subtract)
    out1 = jnp.maximum(batchnorm(conv3x3(x, wb1_ref), g1_ref, be1_ref), 0.0)

    # conv2 -> bn2
    out2 = batchnorm(conv3x3(out1, wb2_ref), g2_ref, be2_ref)

    # residual add (identity path, Cin == Cout) + relu
    o_ref[...] = jnp.maximum(out2 + x, 0.0)


def _banded_weights(wt, width):
    """wt: (3, 3, Cin, Cout) HWIO -> (3, W*Cin, W*Cout) banded matrices.

    Band[kh][w'*Cin+ci, w*Cout+co] = wt[kh, w'-w+1, ci, co] for |w'-w| <= 1,
    else 0 — i.e. the kw taps and the zero padding along W are folded in.
    """
    _, _, cin, cout = wt.shape
    wp = jnp.arange(width)[:, None]            # source column w'
    wo = jnp.arange(width)[None, :]            # output column w
    d = wp - wo + 1                            # kw index
    valid = (d >= 0) & (d < 3)
    dcl = jnp.clip(d, 0, 2)
    bands = []
    for kh in range(3):
        blk = wt[kh][dcl]                                      # (W, W, Cin, Cout)
        blk = jnp.where(valid[:, :, None, None], blk, 0.0)
        bands.append(blk.transpose(0, 2, 1, 3).reshape(width * cin, width * cout))
    return jnp.stack(bands)


@jax.jit
def block_forward(x, w1, b1, g1, be1, w2, b2, g2, be2):
    """x: (N, H, W, C) f32; conv weights HWIO (3, 3, C, C); returns (N, H, W, C).

    Matches the PyTorch Block forward (downsample=None, training-mode BN).
    b1/b2 are accepted for API parity but are mathematically cancelled by the
    BN mean subtraction, so they are not passed to the kernel.
    """
    del b1, b2  # exactly cancelled by training-mode BatchNorm
    n, h, w, c = x.shape
    assert w1.shape == (3, 3, c, c) and w2.shape == (3, 3, c, c), \
        "downsample=None requires Cin == Cout"

    # Glue: lane-dense activation layout + banded weights + lane-tiled BN params.
    x2d = x.reshape(n * h, w * c)
    wb1 = _banded_weights(w1, w)
    wb2 = _banded_weights(w2, w)
    g1l = jnp.tile(g1, w).reshape(1, w * c)
    be1l = jnp.tile(be1, w).reshape(1, w * c)
    g2l = jnp.tile(g2, w).reshape(1, w * c)
    be2l = jnp.tile(be2, w).reshape(1, w * c)

    kernel = functools.partial(_block_kernel, n=n, h=h, w=w, c=c)
    out2d = pl.pallas_call(
        kernel,
        out_shape=jax.ShapeDtypeStruct((n * h, w * c), jnp.float32),
        in_specs=[pl.BlockSpec(memory_space=pltpu.MemorySpace.VMEM)] * 7,
        out_specs=pl.BlockSpec(memory_space=pltpu.MemorySpace.VMEM),
        compiler_params=pltpu.CompilerParams(vmem_limit_bytes=32 * 1024 * 1024),
    )(x2d, wb1, wb2, g1l, be1l, g2l, be2l)

    return out2d.reshape(n, h, w, c)


def block_reference(x, w1, b1, g1, be1, w2, b2, g2, be2):
    """Pure-JAX reference mirroring the PyTorch forward (training-mode BN)."""
    def conv(inp, wt, b):
        y = lax.conv_general_dilated(
            inp, wt, window_strides=(1, 1), padding=((1, 1), (1, 1)),
            dimension_numbers=("NHWC", "HWIO", "NHWC"),
            precision=lax.Precision.HIGHEST)
        return y + b.reshape(1, 1, 1, -1)

    def bn(y, g, b):
        m = jnp.mean(y, axis=(0, 1, 2), keepdims=True)
        v = jnp.mean((y - m) ** 2, axis=(0, 1, 2), keepdims=True)
        return (y - m) / jnp.sqrt(v + EPS) * g.reshape(1, 1, 1, -1) + b.reshape(1, 1, 1, -1)

    out = jax.nn.relu(bn(conv(x, w1, b1), g1, be1))
    out = bn(conv(out, w2, b2), g2, be2)
    return jax.nn.relu(out + x)


if __name__ == "__main__":
    # Small shapes: NCHW (2, 4, 16, 16)  ->  NHWC (2, 16, 16, 4)
    N, H, W, C = 2, 16, 16, 4
    key = jax.random.PRNGKey(0)
    ks = jax.random.split(key, 5)

    x = jax.random.normal(ks[0], (N, H, W, C), jnp.float32)

    # Deterministic parameter init (uniform, kaiming-like bound); gamma=1, beta=0.
    bound = 1.0 / (C * 9) ** 0.5
    w1 = jax.random.uniform(ks[1], (3, 3, C, C), jnp.float32, -bound, bound)
    b1 = jax.random.uniform(ks[2], (C,), jnp.float32, -bound, bound)
    w2 = jax.random.uniform(ks[3], (3, 3, C, C), jnp.float32, -bound, bound)
    b2 = jax.random.uniform(ks[4], (C,), jnp.float32, -bound, bound)
    g1 = jnp.ones((C,), jnp.float32)
    be1 = jnp.zeros((C,), jnp.float32)
    g2 = jnp.ones((C,), jnp.float32)
    be2 = jnp.zeros((C,), jnp.float32)

    out = block_forward(x, w1, b1, g1, be1, w2, b2, g2, be2)
    out = jax.block_until_ready(out)

    ref = block_reference(x, w1, b1, g1, be1, w2, b2, g2, be2)
    max_err = float(jnp.max(jnp.abs(out - ref)))
    assert out.shape == (N, H, W, C)
    assert max_err < 2e-2, f"max abs error too large: {max_err}"

    print("KERNEL_OK")
</pallas_src>

<mosaic_0001>
module attributes {stable_mosaic.version = 11 : i64} {
  func.func @_block_kernel(%arg0: memref<32x64xf32, #tpu.memory_space<vmem>>, %arg1: memref<3x64x64xf32, #tpu.memory_space<vmem>>, %arg2: memref<3x64x64xf32, #tpu.memory_space<vmem>>, %arg3: memref<1x64xf32, #tpu.memory_space<vmem>>, %arg4: memref<1x64xf32, #tpu.memory_space<vmem>>, %arg5: memref<1x64xf32, #tpu.memory_space<vmem>>, %arg6: memref<1x64xf32, #tpu.memory_space<vmem>>, %arg7: memref<32x64xf32, #tpu.memory_space<vmem>>) attributes {dimension_semantics = [], scalar_prefetch = 0 : i64, scratch_operands = 0 : i64, tpu.core_type = #tpu.core_type<tc>} {
    %0 = tpu.iota {dimensions = array<i32: 0>} : vector<32x32xi32>
    %1 = tpu.iota {dimensions = array<i32: 1>} : vector<32x32xi32>
    %c16_i32 = arith.constant 16 : i32
    %c0_i32 = arith.constant 0 : i32
    %2 = arith.cmpi eq, %c16_i32, %c0_i32 : i32
    %c1_i32 = arith.constant 1 : i32
    %3 = arith.select %2, %c1_i32, %c16_i32 : i32
    %4 = vector.broadcast %3 : i32 to vector<32x32xi32>
    %5 = arith.remsi %0, %4 : vector<32x32xi32>
    %c0_i32_0 = arith.constant 0 : i32
    %6 = vector.broadcast %c0_i32_0 : i32 to vector<32x32xi32>
    %7 = arith.cmpi ne, %5, %6 : vector<32x32xi32>
    %c0_i32_1 = arith.constant 0 : i32
    %8 = vector.broadcast %c0_i32_1 : i32 to vector<32x32xi32>
    %9 = arith.cmpi slt, %5, %8 : vector<32x32xi32>
    %c0_i32_2 = arith.constant 0 : i32
    %10 = arith.cmpi slt, %3, %c0_i32_2 : i32
    %11 = vector.broadcast %10 : i1 to vector<32x32xi1>
    %12 = vector.broadcast %11 : vector<32x32xi1> to vector<32x32xi1>
    %13 = arith.xori %9, %12 : vector<32x32xi1>
    %14 = arith.andi %13, %7 : vector<32x32xi1>
    %15 = vector.broadcast %3 : i32 to vector<32x32xi32>
    %16 = arith.addi %5, %15 : vector<32x32xi32>
    %17 = arith.select %14, %16, %5 : vector<32x32xi1>, vector<32x32xi32>
    %c1_i32_3 = arith.constant 1 : i32
    %18 = vector.broadcast %c1_i32_3 : i32 to vector<32x32xi32>
    %19 = arith.subi %0, %18 : vector<32x32xi32>
    %20 = arith.cmpi eq, %1, %19 : vector<32x32xi32>
    %c1_i32_4 = arith.constant 1 : i32
    %21 = vector.broadcast %c1_i32_4 : i32 to vector<32x32xi32>
    %22 = arith.cmpi sge, %17, %21 : vector<32x32xi32>
    %23 = arith.andi %20, %22 : vector<32x32xi1>
    %cst = arith.constant 1.000000e+00 : f32
    %cst_5 = arith.constant 0.000000e+00 : f32
    %24 = vector.broadcast %cst : f32 to vector<32x32xf32>
    %25 = vector.broadcast %cst_5 : f32 to vector<32x32xf32>
    %26 = arith.select %23, %24, %25 : vector<32x32xi1>, vector<32x32xf32>
    %c1_i32_6 = arith.constant 1 : i32
    %27 = vector.broadcast %c1_i32_6 : i32 to vector<32x32xi32>
    %28 = arith.addi %0, %27 : vector<32x32xi32>
    %29 = arith.cmpi eq, %1, %28 : vector<32x32xi32>
    %c14_i32 = arith.constant 14 : i32
    %30 = vector.broadcast %c14_i32 : i32 to vector<32x32xi32>
    %31 = arith.cmpi sle, %17, %30 : vector<32x32xi32>
    %32 = arith.andi %29, %31 : vector<32x32xi1>
    %cst_7 = arith.constant 1.000000e+00 : f32
    %cst_8 = arith.constant 0.000000e+00 : f32
    %33 = vector.broadcast %cst_7 : f32 to vector<32x32xf32>
    %34 = vector.broadcast %cst_8 : f32 to vector<32x32xf32>
    %35 = arith.select %32, %33, %34 : vector<32x32xi1>, vector<32x32xf32>
    %36 = tpu.iota {dimensions = array<i32: 0>} : vector<64x64xi32>
    %37 = tpu.iota {dimensions = array<i32: 1>} : vector<64x64xi32>
    %c4_i32 = arith.constant 4 : i32
    %c0_i32_9 = arith.constant 0 : i32
    %38 = arith.cmpi eq, %c4_i32, %c0_i32_9 : i32
    %c1_i32_10 = arith.constant 1 : i32
    %39 = arith.select %38, %c1_i32_10, %c4_i32 : i32
    %40 = vector.broadcast %39 : i32 to vector<64x64xi32>
    %41 = arith.remsi %36, %40 : vector<64x64xi32>
    %c0_i32_11 = arith.constant 0 : i32
    %42 = vector.broadcast %c0_i32_11 : i32 to vector<64x64xi32>
    %43 = arith.cmpi ne, %41, %42 : vector<64x64xi32>
    %c0_i32_12 = arith.constant 0 : i32
    %44 = vector.broadcast %c0_i32_12 : i32 to vector<64x64xi32>
    %45 = arith.cmpi slt, %41, %44 : vector<64x64xi32>
    %c0_i32_13 = arith.constant 0 : i32
    %46 = arith.cmpi slt, %39, %c0_i32_13 : i32
    %47 = vector.broadcast %46 : i1 to vector<64x64xi1>
    %48 = vector.broadcast %47 : vector<64x64xi1> to vector<64x64xi1>
    %49 = arith.xori %45, %48 : vector<64x64xi1>
    %50 = arith.andi %49, %43 : vector<64x64xi1>
    %51 = vector.broadcast %39 : i32 to vector<64x64xi32>
    %52 = arith.addi %41, %51 : vector<64x64xi32>
    %53 = arith.select %50, %52, %41 : vector<64x64xi1>, vector<64x64xi32>
    %c4_i32_14 = arith.constant 4 : i32
    %c0_i32_15 = arith.constant 0 : i32
    %54 = arith.cmpi eq, %c4_i32_14, %c0_i32_15 : i32
    %c1_i32_16 = arith.constant 1 : i32
    %55 = arith.select %54, %c1_i32_16, %c4_i32_14 : i32
    %56 = vector.broadcast %55 : i32 to vector<64x64xi32>
    %57 = arith.remsi %37, %56 : vector<64x64xi32>
    %c0_i32_17 = arith.constant 0 : i32
    %58 = vector.broadcast %c0_i32_17 : i32 to vector<64x64xi32>
    %59 = arith.cmpi ne, %57, %58 : vector<64x64xi32>
    %c0_i32_18 = arith.constant 0 : i32
    %60 = vector.broadcast %c0_i32_18 : i32 to vector<64x64xi32>
    %61 = arith.cmpi slt, %57, %60 : vector<64x64xi32>
    %c0_i32_19 = arith.constant 0 : i32
    %62 = arith.cmpi slt, %55, %c0_i32_19 : i32
    %63 = vector.broadcast %62 : i1 to vector<64x64xi1>
    %64 = vector.broadcast %63 : vector<64x64xi1> to vector<64x64xi1>
    %65 = arith.xori %61, %64 : vector<64x64xi1>
    %66 = arith.andi %65, %59 : vector<64x64xi1>
    %67 = vector.broadcast %55 : i32 to vector<64x64xi32>
    %68 = arith.addi %57, %67 : vector<64x64xi32>
    %69 = arith.select %66, %68, %57 : vector<64x64xi1>, vector<64x64xi32>
    %70 = arith.cmpi eq, %53, %69 : vector<64x64xi32>
    %cst_20 = arith.constant 1.000000e+00 : f32
    %cst_21 = arith.constant 0.000000e+00 : f32
    %71 = vector.broadcast %cst_20 : f32 to vector<64x64xf32>
    %72 = vector.broadcast %cst_21 : f32 to vector<64x64xf32>
    %73 = arith.select %70, %71, %72 : vector<64x64xi1>, vector<64x64xf32>
    %c0 = arith.constant 0 : index
    %c0_22 = arith.constant 0 : index
    %74 = vector.load %arg0[%c0, %c0_22] : memref<32x64xf32, #tpu.memory_space<vmem>>, vector<32x64xf32>
    %cst_23 = arith.constant dense<0.000000e+00> : vector<32x64xf32>
    %75 = tpu.matmul %26, %74, %cst_23 {dimension_numbers = #tpu.dot_dimension_numbers<[1], [0], [0], [1], [0, 0, 1, 1], [], []>} : vector<32x32xf32>, vector<32x64xf32>, vector<32x64xf32> -> vector<32x64xf32>
    %cst_24 = arith.constant dense<0.000000e+00> : vector<32x64xf32>
    %76 = tpu.matmul %35, %74, %cst_24 {dimension_numbers = #tpu.dot_dimension_numbers<[1], [0], [0], [1], [0, 0, 1, 1], [], []>} : vector<32x32xf32>, vector<32x64xf32>, vector<32x64xf32> -> vector<32x64xf32>
    %c1 = arith.constant 1 : index
    %c0_25 = arith.constant 0 : index
    %c0_26 = arith.constant 0 : index
    %77 = vector.load %arg1[%c1, %c0_25, %c0_26] : memref<3x64x64xf32, #tpu.memory_space<vmem>>, vector<1x64x64xf32>
    %78 = vector.shape_cast %77 : vector<1x64x64xf32> to vector<64x64xf32>
    %cst_27 = arith.constant dense<0.000000e+00> : vector<32x64xf32>
    %79 = tpu.matmul %74, %78, %cst_27 {dimension_numbers = #tpu.dot_dimension_numbers<[1], [0], [0], [1], [0, 0, 1, 1], [], []>} : vector<32x64xf32>, vector<64x64xf32>, vector<32x64xf32> -> vector<32x64xf32>
    %c0_28 = arith.constant 0 : index
    %c0_29 = arith.constant 0 : index
    %c0_30 = arith.constant 0 : index
    %80 = vector.load %arg1[%c0_28, %c0_29, %c0_30] : memref<3x64x64xf32, #tpu.memory_space<vmem>>, vector<1x64x64xf32>
    %81 = vector.shape_cast %80 : vector<1x64x64xf32> to vector<64x64xf32>
    %cst_31 = arith.constant dense<0.000000e+00> : vector<32x64xf32>
    %82 = tpu.matmul %75, %81, %cst_31 {dimension_numbers = #tpu.dot_dimension_numbers<[1], [0], [0], [1], [0, 0, 1, 1], [], []>} : vector<32x64xf32>, vector<64x64xf32>, vector<32x64xf32> -> vector<32x64xf32>
    %83 = arith.addf %79, %82 : vector<32x64xf32>
    %c2 = arith.constant 2 : index
    %c0_32 = arith.constant 0 : index
    %c0_33 = arith.constant 0 : index
    %84 = vector.load %arg1[%c2, %c0_32, %c0_33] : memref<3x64x64xf32, #tpu.memory_space<vmem>>, vector<1x64x64xf32>
    %85 = vector.shape_cast %84 : vector<1x64x64xf32> to vector<64x64xf32>
    %cst_34 = arith.constant dense<0.000000e+00> : vector<32x64xf32>
    %86 = tpu.matmul %76, %85, %cst_34 {dimension_numbers = #tpu.dot_dimension_numbers<[1], [0], [0], [1], [0, 0, 1, 1], [], []>} : vector<32x64xf32>, vector<64x64xf32>, vector<32x64xf32> -> vector<32x64xf32>
    %87 = arith.addf %83, %86 : vector<32x64xf32>
    %cst_35 = arith.constant dense<0.000000e+00> : vector<32x64xf32>
    %88 = tpu.matmul %87, %73, %cst_35 {dimension_numbers = #tpu.dot_dimension_numbers<[1], [0], [0], [1], [0, 0, 1, 1], [], []>} : vector<32x64xf32>, vector<64x64xf32>, vector<32x64xf32> -> vector<32x64xf32>
    %cst_36 = arith.constant dense<0.000000e+00> : vector<64xf32>
    %89 = vector.multi_reduction <add>, %88, %cst_36 [0] : vector<32x64xf32> to vector<64xf32>
    %90 = vector.shape_cast %89 : vector<64xf32> to vector<1x64xf32>
    %91 = arith.mulf %87, %87 : vector<32x64xf32>
    %cst_37 = arith.constant dense<0.000000e+00> : vector<32x64xf32>
    %92 = tpu.matmul %91, %73, %cst_37 {dimension_numbers = #tpu.dot_dimension_numbers<[1], [0], [0], [1], [0, 0, 1, 1], [], []>} : vector<32x64xf32>, vector<64x64xf32>, vector<32x64xf32> -> vector<32x64xf32>
    %cst_38 = arith.constant dense<0.000000e+00> : vector<64xf32>
    %93 = vector.multi_reduction <add>, %92, %cst_38 [0] : vector<32x64xf32> to vector<64xf32>
    %94 = vector.shape_cast %93 : vector<64xf32> to vector<1x64xf32>
    %cst_39 = arith.constant 0.001953125 : f32
    %95 = vector.broadcast %cst_39 : f32 to vector<1x64xf32>
    %96 = arith.mulf %90, %95 : vector<1x64xf32>
    %cst_40 = arith.constant 0.001953125 : f32
    %97 = vector.broadcast %cst_40 : f32 to vector<1x64xf32>
    %98 = arith.mulf %94, %97 : vector<1x64xf32>
    %99 = arith.mulf %96, %96 : vector<1x64xf32>
    %100 = arith.subf %98, %99 : vector<1x64xf32>
    %c0_41 = arith.constant 0 : index
    %c0_42 = arith.constant 0 : index
    %101 = vector.load %arg3[%c0_41, %c0_42] : memref<1x64xf32, #tpu.memory_space<vmem>>, vector<1x64xf32>
    %cst_43 = arith.constant 9.99999974E-6 : f32
    %102 = vector.broadcast %cst_43 : f32 to vector<1x64xf32>
    %103 = arith.addf %100, %102 : vector<1x64xf32>
    %104 = math.rsqrt %103 : vector<1x64xf32>
    %105 = arith.mulf %101, %104 : vector<1x64xf32>
    %c0_44 = arith.constant 0 : index
    %c0_45 = arith.constant 0 : index
    %106 = vector.load %arg4[%c0_44, %c0_45] : memref<1x64xf32, #tpu.memory_space<vmem>>, vector<1x64xf32>
    %107 = arith.mulf %96, %105 : vector<1x64xf32>
    %108 = arith.subf %106, %107 : vector<1x64xf32>
    %109 = vector.broadcast %105 : vector<1x64xf32> to vector<32x64xf32>
    %110 = arith.mulf %87, %109 : vector<32x64xf32>
    %111 = vector.broadcast %108 : vector<1x64xf32> to vector<32x64xf32>
    %112 = arith.addf %110, %111 : vector<32x64xf32>
    %cst_46 = arith.constant 0.000000e+00 : f32
    %113 = vector.broadcast %cst_46 : f32 to vector<32x64xf32>
    %114 = arith.maximumf %112, %113 : vector<32x64xf32>
    %cst_47 = arith.constant dense<0.000000e+00> : vector<32x64xf32>
    %115 = tpu.matmul %26, %114, %cst_47 {dimension_numbers = #tpu.dot_dimension_numbers<[1], [0], [0], [1], [0, 0, 1, 1], [], []>} : vector<32x32xf32>, vector<32x64xf32>, vector<32x64xf32> -> vector<32x64xf32>
    %cst_48 = arith.constant dense<0.000000e+00> : vector<32x64xf32>
    %116 = tpu.matmul %35, %114, %cst_48 {dimension_numbers = #tpu.dot_dimension_numbers<[1], [0], [0], [1], [0, 0, 1, 1], [], []>} : vector<32x32xf32>, vector<32x64xf32>, vector<32x64xf32> -> vector<32x64xf32>
    %c1_49 = arith.constant 1 : index
    %c0_50 = arith.constant 0 : index
    %c0_51 = arith.constant 0 : index
    %117 = vector.load %arg2[%c1_49, %c0_50, %c0_51] : memref<3x64x64xf32, #tpu.memory_space<vmem>>, vector<1x64x64xf32>
    %118 = vector.shape_cast %117 : vector<1x64x64xf32> to vector<64x64xf32>
    %cst_52 = arith.constant dense<0.000000e+00> : vector<32x64xf32>
    %119 = tpu.matmul %114, %118, %cst_52 {dimension_numbers = #tpu.dot_dimension_numbers<[1], [0], [0], [1], [0, 0, 1, 1], [], []>} : vector<32x64xf32>, vector<64x64xf32>, vector<32x64xf32> -> vector<32x64xf32>
    %c0_53 = arith.constant 0 : index
    %c0_54 = arith.constant 0 : index
    %c0_55 = arith.constant 0 : index
    %120 = vector.load %arg2[%c0_53, %c0_54, %c0_55] : memref<3x64x64xf32, #tpu.memory_space<vmem>>, vector<1x64x64xf32>
    %121 = vector.shape_cast %120 : vector<1x64x64xf32> to vector<64x64xf32>
    %cst_56 = arith.constant dense<0.000000e+00> : vector<32x64xf32>
    %122 = tpu.matmul %115, %121, %cst_56 {dimension_numbers = #tpu.dot_dimension_numbers<[1], [0], [0], [1], [0, 0, 1, 1], [], []>} : vector<32x64xf32>, vector<64x64xf32>, vector<32x64xf32> -> vector<32x64xf32>
    %123 = arith.addf %119, %122 : vector<32x64xf32>
    %c2_57 = arith.constant 2 : index
    %c0_58 = arith.constant 0 : index
    %c0_59 = arith.constant 0 : index
    %124 = vector.load %arg2[%c2_57, %c0_58, %c0_59] : memref<3x64x64xf32, #tpu.memory_space<vmem>>, vector<1x64x64xf32>
    %125 = vector.shape_cast %124 : vector<1x64x64xf32> to vector<64x64xf32>
    %cst_60 = arith.constant dense<0.000000e+00> : vector<32x64xf32>
    %126 = tpu.matmul %116, %125, %cst_60 {dimension_numbers = #tpu.dot_dimension_numbers<[1], [0], [0], [1], [0, 0, 1, 1], [], []>} : vector<32x64xf32>, vector<64x64xf32>, vector<32x64xf32> -> vector<32x64xf32>
    %127 = arith.addf %123, %126 : vector<32x64xf32>
    %cst_61 = arith.constant dense<0.000000e+00> : vector<32x64xf32>
    %128 = tpu.matmul %127, %73, %cst_61 {dimension_numbers = #tpu.dot_dimension_numbers<[1], [0], [0], [1], [0, 0, 1, 1], [], []>} : vector<32x64xf32>, vector<64x64xf32>, vector<32x64xf32> -> vector<32x64xf32>
    %cst_62 = arith.constant dense<0.000000e+00> : vector<64xf32>
    %129 = vector.multi_reduction <add>, %128, %cst_62 [0] : vector<32x64xf32> to vector<64xf32>
    %130 = vector.shape_cast %129 : vector<64xf32> to vector<1x64xf32>
    %131 = arith.mulf %127, %127 : vector<32x64xf32>
    %cst_63 = arith.constant dense<0.000000e+00> : vector<32x64xf32>
    %132 = tpu.matmul %131, %73, %cst_63 {dimension_numbers = #tpu.dot_dimension_numbers<[1], [0], [0], [1], [0, 0, 1, 1], [], []>} : vector<32x64xf32>, vector<64x64xf32>, vector<32x64xf32> -> vector<32x64xf32>
    %cst_64 = arith.constant dense<0.000000e+00> : vector<64xf32>
    %133 = vector.multi_reduction <add>, %132, %cst_64 [0] : vector<32x64xf32> to vector<64xf32>
    %134 = vector.shape_cast %133 : vector<64xf32> to vector<1x64xf32>
    %cst_65 = arith.constant 0.001953125 : f32
    %135 = vector.broadcast %cst_65 : f32 to vector<1x64xf32>
    %136 = arith.mulf %130, %135 : vector<1x64xf32>
    %cst_66 = arith.constant 0.001953125 : f32
    %137 = vector.broadcast %cst_66 : f32 to vector<1x64xf32>
    %138 = arith.mulf %134, %137 : vector<1x64xf32>
    %139 = arith.mulf %136, %136 : vector<1x64xf32>
    %140 = arith.subf %138, %139 : vector<1x64xf32>
    %c0_67 = arith.constant 0 : index
    %c0_68 = arith.constant 0 : index
    %141 = vector.load %arg5[%c0_67, %c0_68] : memref<1x64xf32, #tpu.memory_space<vmem>>, vector<1x64xf32>
    %cst_69 = arith.constant 9.99999974E-6 : f32
    %142 = vector.broadcast %cst_69 : f32 to vector<1x64xf32>
    %143 = arith.addf %140, %142 : vector<1x64xf32>
    %144 = math.rsqrt %143 : vector<1x64xf32>
    %145 = arith.mulf %141, %144 : vector<1x64xf32>
    %c0_70 = arith.constant 0 : index
    %c0_71 = arith.constant 0 : index
    %146 = vector.load %arg6[%c0_70, %c0_71] : memref<1x64xf32, #tpu.memory_space<vmem>>, vector<1x64xf32>
    %147 = arith.mulf %136, %145 : vector<1x64xf32>
    %148 = arith.subf %146, %147 : vector<1x64xf32>
    %149 = vector.broadcast %145 : vector<1x64xf32> to vector<32x64xf32>
    %150 = arith.mulf %127, %149 : vector<32x64xf32>
    %151 = vector.broadcast %148 : vector<1x64xf32> to vector<32x64xf32>
    %152 = arith.addf %150, %151 : vector<32x64xf32>
    %153 = arith.addf %152, %74 : vector<32x64xf32>
    %cst_72 = arith.constant 0.000000e+00 : f32
    %154 = vector.broadcast %cst_72 : f32 to vector<32x64xf32>
    %155 = arith.maximumf %153, %154 : vector<32x64xf32>
    %c0_73 = arith.constant 0 : index
    %c0_74 = arith.constant 0 : index
    %156 = vector.load %arg7[%c0_73, %c0_74] : memref<32x64xf32, #tpu.memory_space<vmem>>, vector<32x64xf32>
    tpu.vector_store %arg7[%c0_73, %c0_74], %155 {strides = array<i32>} : memref<32x64xf32, #tpu.memory_space<vmem>>, vector<32x64xf32>,
    return
  }
}

</mosaic_0001>

<llo_original>
// kernel: tile.23
$region0: #{tile.23}
  #allocation0 [shape = 's32[1]{0}', space=sflag, size = 0x4, scoped, tag = 'scoped memory for tile.23']
  %s0 = inlined_call_operand.vmem [shape: f32[4], index: 0, kind: input, shape index: {}]
  %s1 = inlined_call_operand.vmem [shape: f32[16,4], index: 1, kind: output, shape index: {}]
  // Predicated region
  $region2: #{tile.23} parent=0 // pred_check
    _
  $region3: #{tile.23} parent=0 // pred_check_branch
    %3 = sbr.rel (0) target = $region5
  $region4: #{tile.23} parent=0 // pred_region
    _
  $region5: #{tile.23} parent=0 // pred_fallthru
    _
  %v4 = vld [vmem:[%s0] ss:$0 sm:$0xff]
  %5 = vst [vmem:[%s1] sm:$0xff] %v4
  %s6 = scalar_lea.vmem %s1, 8
  %7 = vst [vmem:[%s6] sm:$0xff] %v4

// kernel: tile.24
$region0: #{tile.24}
  %s0 = inlined_call_operand.vmem [shape: f32[16,4], index: 0, kind: input, shape index: {}]
  %s1 = inlined_call_operand.vmem [shape: f32[1,64], index: 1, kind: output, shape index: {}]
  $region1: #{tile.24} parent=0
    #allocation0 [shape = 'u8[4096]{0}', space=vmem, size = 0x1000, scoped, tag = 'scoped mem for output reshape']
    %v2 = vld [vmem:[%s0] sm:$0x1]
    %vm3 = vcmask 31744
    %4 = vst.msk [vmem:[#allocation0] sm:$0x1] %vm3, %v2
    %s5 = scalar_lea.vmem %s0, 15
    %v6 = vld [vmem:[%s5] sm:$0x1]
    %7 = vrot.lane.b32.xlu0 %v6, 60
    %v8 = vpop.permute.xlu0 %7
    %vm9 = vcmask 523744
    %10 = vst.msk [vmem:[#allocation0] sm:$0x1] %vm9, %v8
    %s11 = scalar_lea.vmem %s0, 14
    %v12 = vld [vmem:[%s11] sm:$0x1]
    %13 = vrot.lane.b32.xlu0 %v12, 56
    %v14 = vpop.permute.xlu0 %13
    %vm15 = vcmask 490944
    %16 = vst.msk [vmem:[#allocation0] sm:$0x1] %vm15, %v14
    %s17 = scalar_lea.vmem %s0, 13
    %v18 = vld [vmem:[%s17] sm:$0x1]
    %19 = vrot.lane.b32.xlu0 %v18, 52
    %v20 = vpop.permute.xlu0 %19
    %vm21 = vcmask 458144
    %22 = vst.msk [vmem:[#allocation0] sm:$0x1] %vm21, %v20
    %s23 = scalar_lea.vmem %s0, 12
    %v24 = vld [vmem:[%s23] sm:$0x1]
    %25 = vrot.lane.b32.xlu0 %v24, 48
    %v26 = vpop.permute.xlu0 %25
    %vm27 = vcmask 425344
    %28 = vst.msk [vmem:[#allocation0] sm:$0x1] %vm27, %v26
    %s29 = scalar_lea.vmem %s0, 11
    %v30 = vld [vmem:[%s29] sm:$0x1]
    %31 = vrot.lane.b32.xlu0 %v30, 44
    %v32 = vpop.permute.xlu0 %31
    %vm33 = vcmask 392544
    %34 = vst.msk [vmem:[#allocation0] sm:$0x1] %vm33, %v32
    %s35 = scalar_lea.vmem %s0, 10
    %v36 = vld [vmem:[%s35] sm:$0x1]
    %37 = vrot.lane.b32.xlu0 %v36, 40
    %v38 = vpop.permute.xlu0 %37
    %vm39 = vcmask 359744
    %40 = vst.msk [vmem:[#allocation0] sm:$0x1] %vm39, %v38
    %s41 = scalar_lea.vmem %s0, 9
    %v42 = vld [vmem:[%s41] sm:$0x1]
    %43 = vrot.lane.b32.xlu0 %v42, 36
    %v44 = vpop.permute.xlu0 %43
    %vm45 = vcmask 326944
    %46 = vst.msk [vmem:[#allocation0] sm:$0x1] %vm45, %v44
    %s47 = scalar_lea.vmem %s0, 8
    %v48 = vld [vmem:[%s47] sm:$0x1]
    %49 = vrot.lane.b32.xlu0 %v48, 32
    %v50 = vpop.permute.xlu0 %49
    %vm51 = vcmask 294144
    %52 = vst.msk [vmem:[#allocation0] sm:$0x1] %vm51, %v50
    %s53 = scalar_lea.vmem %s0, 7
    %v54 = vld [vmem:[%s53] sm:$0x1]
    %55 = vrot.lane.b32.xlu0 %v54, 28
    %v56 = vpop.permute.xlu0 %55
    %vm57 = vcmask 261344
    %58 = vst.msk [vmem:[#allocation0] sm:$0x1] %vm57, %v56
    %s59 = scalar_lea.vmem %s0, 6
    %v60 = vld [vmem:[%s59] sm:$0x1]
    %61 = vrot.lane.b32.xlu0 %v60, 24
    %v62 = vpop.permute.xlu0 %61
    %vm63 = vcmask 228544
    %64 = vst.msk [vmem:[#allocation0] sm:$0x1] %vm63, %v62
    %s65 = scalar_lea.vmem %s0, 5
    %v66 = vld [vmem:[%s65] sm:$0x1]
    %67 = vrot.lane.b32.xlu0 %v66, 20
    %v68 = vpop.permute.xlu0 %67
    %vm69 = vcmask 195744
    %70 = vst.msk [vmem:[#allocation0] sm:$0x1] %vm69, %v68
    %s71 = scalar_lea.vmem %s0, 4
    %v72 = vld [vmem:[%s71] sm:$0x1]
    %73 = vrot.lane.b32.xlu0 %v72, 16
    %v74 = vpop.permute.xlu0 %73
    %vm75 = vcmask 162944
    %76 = vst.msk [vmem:[#allocation0] sm:$0x1] %vm75, %v74
    %s77 = scalar_lea.vmem %s0, 3
    %v78 = vld [vmem:[%s77] sm:$0x1]
    %79 = vrot.lane.b32.xlu0 %v78, 12
    %v80 = vpop.permute.xlu0 %79
    %vm81 = vcmask 130144
    %82 = vst.msk [vmem:[#allocation0] sm:$0x1] %vm81, %v80
    %s83 = scalar_lea.vmem %s0, 2
    %v84 = vld [vmem:[%s83] sm:$0x1]
    %85 = vrot.lane.b32.xlu0 %v84, 8
    %v86 = vpop.permute.xlu0 %85
    %vm87 = vcmask 97344
    %88 = vst.msk [vmem:[#allocation0] sm:$0x1] %vm87, %v86
    %s89 = scalar_lea.vmem %s0, 1
    %v90 = vld [vmem:[%s89] sm:$0x1]
    %91 = vrot.lane.b32.xlu0 %v90, 4
    %v92 = vpop.permute.xlu0 %91
    %vm93 = vcmask 64544
    %94 = vst.msk [vmem:[#allocation0] sm:$0x1] %vm93, %v92
    %s96 = sshllo.u32 0, 1
    %v98 = vld [vmem:[#allocation0] sm:%s96]
    %s99 = sshllo.u32 0, 1
    %100 = vst [vmem:[%s1] sm:%s99] %v98

// kernel: block_forward.1
$region0: #{block_forward.1}
  #allocation0 [shape = 'u32[]', space=smem, size = 0x4, offset = 0x4, fixed_abs, tag = 'smem constant byte address 0x4 - core index']
  #allocation1 [shape = 'u32[144,128]{1,0:T(1,128)}', space=vmem, size = 0x12000, scoped, tag = 'internal scratch']
  %s0 = inlined_call_operand.vmem [shape: f32[32,64], index: 0, kind: input, shape index: {}]
  %s1 = inlined_call_operand.vmem [shape: f32[3,64,64], index: 1, kind: input, shape index: {}]
  %s2 = inlined_call_operand.vmem [shape: f32[3,64,64], index: 2, kind: input, shape index: {}]
  %s3 = inlined_call_operand.vmem [shape: f32[1,64], index: 3, kind: input, shape index: {}]
  %s4 = inlined_call_operand.vmem [shape: f32[1,64], index: 4, kind: input, shape index: {}]
  %s5 = inlined_call_operand.vmem [shape: f32[1,64], index: 5, kind: input, shape index: {}]
  %s6 = inlined_call_operand.vmem [shape: f32[1,64], index: 6, kind: input, shape index: {}]
  %s7 = inlined_call_operand.vmem [shape: f32[32,64], index: 7, kind: output, shape index: {}]
  %s8 = sld [smem:[#allocation0]]
  $region38: #{block_forward.1} parent=0
    _
  %s10 = ssub.s32 1, %s8
  %s11 = scalar_select 0, %s10, %s8
  // Predicated region
  $region2: #{block_forward.1} parent=0 // pred_check
    _
  $region3: #{block_forward.1} parent=0 // pred_check_branch
    %13 = sbr.rel (0) target = $region5
  $region4: #{block_forward.1} parent=0 // pred_region
    _
  $region5: #{block_forward.1} parent=0 // pred_fallthru
    _
  // Predicated region
  $region6: #{block_forward.1} parent=0 // pred_check
    _
  $region7: #{block_forward.1} parent=0 // pred_check_branch
    %15 = sbr.rel (0) target = $region9
  $region8: #{block_forward.1} parent=0 // pred_region
    _
  $region9: #{block_forward.1} parent=0 // pred_fallthru
    _
  // Predicated region
  $region10: #{block_forward.1} parent=0 // pred_check
    _
  $region11: #{block_forward.1} parent=0 // pred_check_branch
    %17 = sbr.rel (0) target = $region13
  $region12: #{block_forward.1} parent=0 // pred_region
    _
  $region13: #{block_forward.1} parent=0 // pred_fallthru
    _
  // Predicated region
  $region14: #{block_forward.1} parent=0 // pred_check
    _
  $region15: #{block_forward.1} parent=0 // pred_check_branch
    %19 = sbr.rel (0) target = $region17
  $region16: #{block_forward.1} parent=0 // pred_region
    _
  $region17: #{block_forward.1} parent=0 // pred_fallthru
    _
  // Predicated region
  $region18: #{block_forward.1} parent=0 // pred_check
    _
  $region19: #{block_forward.1} parent=0 // pred_check_branch
    %21 = sbr.rel (0) target = $region21
  $region20: #{block_forward.1} parent=0 // pred_region
    _
  $region21: #{block_forward.1} parent=0 // pred_fallthru
    _
  // Predicated region
  $region22: #{block_forward.1} parent=0 // pred_check
    _
  $region23: #{block_forward.1} parent=0 // pred_check_branch
    %23 = sbr.rel (0) target = $region25
  $region24: #{block_forward.1} parent=0 // pred_region
    _
  $region25: #{block_forward.1} parent=0 // pred_fallthru
    _
  // Predicated region
  $region26: #{block_forward.1} parent=0 // pred_check
    _
  $region27: #{block_forward.1} parent=0 // pred_check_branch
    %25 = sbr.rel (0) target = $region29
  $region28: #{block_forward.1} parent=0 // pred_region
    _
  $region29: #{block_forward.1} parent=0 // pred_fallthru
    _
  %v26 = vlaneseq
  %v27 = vshrl.u32 %v26, 7
  %v28 = vadd.s32 %v27, 8
  %v29 = vadd.s32 %v27, 16
  %v30 = vadd.s32 %v27, 24
  %v31 = vlaneseq
  %v32 = vand.u32 %v31, 127
  %vm33 = vcmp.lt.s32.totalorder %v27, 0
  %v34 = vsub.s32 0, %v27
  %v35 = vsel %vm33, %v34, %v27
  %v36 = vshrl.u32 %v35, 4
  %v37 = vand.u32 %v35, 15
  %v38 = vsub.s32 0, %v37
  %v39 = vsel %vm33, %v38, %v37
  %vm40 = vcmp.lt.s32.totalorder %v28, 0
  %v41 = vsub.s32 0, %v28
  %v42 = vsel %vm40, %v41, %v28
  %v43 = vshrl.u32 %v42, 4
  %v44 = vand.u32 %v42, 15
  %v45 = vsub.s32 0, %v44
  %v46 = vsel %vm40, %v45, %v44
  %vm47 = vcmp.lt.s32.totalorder %v29, 0
  %v48 = vsub.s32 0, %v29
  %v49 = vsel %vm47, %v48, %v29
  %v50 = vshrl.u32 %v49, 4
  %v51 = vand.u32 %v49, 15
  %v52 = vsub.s32 0, %v51
  %v53 = vsel %vm47, %v52, %v51
  %vm54 = vcmp.lt.s32.totalorder %v30, 0
  %v55 = vsub.s32 0, %v30
  %v56 = vsel %vm54, %v55, %v30
  %v57 = vshrl.u32 %v56, 4
  %v58 = vand.u32 %v56, 15
  %v59 = vsub.s32 0, %v58
  %v60 = vsel %vm54, %v59, %v58
  %vm61 = vcmp.ne.s32.totalorder %v39, 0
  %vm62 = vcmp.ne.s32.totalorder %v46, 0
  %vm63 = vcmp.ne.s32.totalorder %v53, 0
  %vm64 = vcmp.ne.s32.totalorder %v60, 0
  %vm65 = vcmp.lt.s32.totalorder %v39, 0
  %vm66 = vcmp.lt.s32.totalorder %v46, 0
  %vm67 = vcmp.lt.s32.totalorder %v53, 0
  %vm68 = vcmp.lt.s32.totalorder %v60, 0
  %vm69 = vmand %vm65, %vm61
  %vm70 = vmand %vm66, %vm62
  %vm71 = vmand %vm67, %vm63
  %vm72 = vmand %vm68, %vm64
  %v73 = vadd.s32 %v39, 16
  %v74 = vadd.s32 %v46, 16
  %v75 = vadd.s32 %v53, 16
  %v76 = vadd.s32 %v60, 16
  %v77 = vsel %vm69, %v73, %v39
  %v78 = vsel %vm70, %v74, %v46
  %v79 = vsel %vm71, %v75, %v53
  %v80 = vsel %vm72, %v76, %v60
  %v81 = vsub.s32 %v27, 1
  %v82 = vsub.s32 %v28, 1
  %v83 = vsub.s32 %v29, 1
  %v84 = vsub.s32 %v30, 1
  %vm85 = vcmp.eq.s32.totalorder %v32, %v81
  %vm86 = vcmp.eq.s32.totalorder %v32, %v82
  %vm87 = vcmp.eq.s32.totalorder %v32, %v83
  %vm88 = vcmp.eq.s32.totalorder %v32, %v84
  %vm89 = vcmp.ge.s32.totalorder %v77, 1
  %vm90 = vcmp.ge.s32.totalorder %v78, 1
  %vm91 = vcmp.ge.s32.totalorder %v79, 1
  %vm92 = vcmp.ge.s32.totalorder %v80, 1
  %vm93 = vmand %vm85, %vm89
  %vm94 = vmand %vm86, %vm90
  %vm95 = vmand %vm87, %vm91
  %vm96 = vmand %vm88, %vm92
  %v97 = vsel %vm93, 1.0, 0.0
  %v98 = vsel %vm94, 1.0, 0.0
  %v99 = vsel %vm95, 1.0, 0.0
  %v100 = vsel %vm96, 1.0, 0.0
  %v101 = vadd.s32 %v27, 1
  %v102 = vadd.s32 %v28, 1
  %v103 = vadd.s32 %v29, 1
  %v104 = vadd.s32 %v30, 1
  %vm105 = vcmp.eq.s32.totalorder %v32, %v101
  %vm106 = vcmp.eq.s32.totalorder %v32, %v102
  %vm107 = vcmp.eq.s32.totalorder %v32, %v103
  %vm108 = vcmp.eq.s32.totalorder %v32, %v104
  %vm109 = vcmp.le.s32.totalorder %v77, 14
  %vm110 = vcmp.le.s32.totalorder %v78, 14
  %vm111 = vcmp.le.s32.totalorder %v79, 14
  %vm112 = vcmp.le.s32.totalorder %v80, 14
  %vm113 = vmand %vm105, %vm109
  %vm114 = vmand %vm106, %vm110
  %vm115 = vmand %vm107, %vm111
  %vm116 = vmand %vm108, %vm112
  %v117 = vsel %vm113, 1.0, 0.0
  %v118 = vsel %vm114, 1.0, 0.0
  %v119 = vsel %vm115, 1.0, 0.0
  %v120 = vsel %vm116, 1.0, 0.0
  %v121 = vadd.s32 %v27, 32
  %v122 = vadd.s32 %v27, 40
  %v123 = vadd.s32 %v27, 48
  %v124 = vadd.s32 %v27, 56
  %vm125 = vcmp.lt.s32.totalorder %v27, 0
  %v126 = vsub.s32 0, %v27
  %v127 = vsel %vm125, %v126, %v27
  %v128 = vshrl.u32 %v127, 2
  %v129 = vand.u32 %v127, 3
  %v130 = vsub.s32 0, %v129
  %v131 = vsel %vm125, %v130, %v129
  %vm132 = vcmp.lt.s32.totalorder %v28, 0
  %v133 = vsub.s32 0, %v28
  %v134 = vsel %vm132, %v133, %v28
  %v135 = vshrl.u32 %v134, 2
  %v136 = vand.u32 %v134, 3
  %v137 = vsub.s32 0, %v136
  %v138 = vsel %vm132, %v137, %v136
  %vm139 = vcmp.lt.s32.totalorder %v29, 0
  %v140 = vsub.s32 0, %v29
  %v141 = vsel %vm139, %v140, %v29
  %v142 = vshrl.u32 %v141, 2
  %v143 = vand.u32 %v141, 3
  %v144 = vsub.s32 0, %v143
  %v145 = vsel %vm139, %v144, %v143
  %vm146 = vcmp.lt.s32.totalorder %v30, 0
  %v147 = vsub.s32 0, %v30
  %v148 = vsel %vm146, %v147, %v30
  %v149 = vshrl.u32 %v148, 2
  %v150 = vand.u32 %v148, 3
  %v151 = vsub.s32 0, %v150
  %v152 = vsel %vm146, %v151, %v150
  %vm153 = vcmp.lt.s32.totalorder %v121, 0
  %v154 = vsub.s32 0, %v121
  %v155 = vsel %vm153, %v154, %v121
  %v156 = vshrl.u32 %v155, 2
  %v157 = vand.u32 %v155, 3
  %v158 = vsub.s32 0, %v157
  %v159 = vsel %vm153, %v158, %v157
  %vm160 = vcmp.lt.s32.totalorder %v122, 0
  %v161 = vsub.s32 0, %v122
  %v162 = vsel %vm160, %v161, %v122
  %v163 = vshrl.u32 %v162, 2
  %v164 = vand.u32 %v162, 3
  %v165 = vsub.s32 0, %v164
  %v166 = vsel %vm160, %v165, %v164
  %vm167 = vcmp.lt.s32.totalorder %v123, 0
  %v168 = vsub.s32 0, %v123
  %v169 = vsel %vm167, %v168, %v123
  %v170 = vshrl.u32 %v169, 2
  %v171 = vand.u32 %v169, 3
  %v172 = vsub.s32 0, %v171
  %v173 = vsel %vm167, %v172, %v171
  %vm174 = vcmp.lt.s32.totalorder %v124, 0
  %v175 = vsub.s32 0, %v124
  %v176 = vsel %vm174, %v175, %v124
  %v177 = vshrl.u32 %v176, 2
  %v178 = vand.u32 %v176, 3
  %v179 = vsub.s32 0, %v178
  %v180 = vsel %vm174, %v179, %v178
  %vm181 = vcmp.ne.s32.totalorder %v131, 0
  %vm182 = vcmp.ne.s32.totalorder %v138, 0
  %vm183 = vcmp.ne.s32.totalorder %v145, 0
  %vm184 = vcmp.ne.s32.totalorder %v152, 0
  %vm185 = vcmp.ne.s32.totalorder %v159, 0
  %vm186 = vcmp.ne.s32.totalorder %v166, 0
  %vm187 = vcmp.ne.s32.totalorder %v173, 0
  %vm188 = vcmp.ne.s32.totalorder %v180, 0
  %vm189 = vcmp.lt.s32.totalorder %v131, 0
  %vm190 = vcmp.lt.s32.totalorder %v138, 0
  %vm191 = vcmp.lt.s32.totalorder %v145, 0
  %vm192 = vcmp.lt.s32.totalorder %v152, 0
  %vm193 = vcmp.lt.s32.totalorder %v159, 0
  %vm194 = vcmp.lt.s32.totalorder %v166, 0
  %vm195 = vcmp.lt.s32.totalorder %v173, 0
  %vm196 = vcmp.lt.s32.totalorder %v180, 0
  %vm197 = vmand %vm189, %vm181
  %vm198 = vmand %vm190, %vm182
  %vm199 = vmand %vm191, %vm183
  %vm200 = vmand %vm192, %vm184
  %vm201 = vmand %vm193, %vm185
  %vm202 = vmand %vm194, %vm186
  %vm203 = vmand %vm195, %vm187
  %vm204 = vmand %vm196, %vm188
  %v205 = vadd.s32 %v131, 4
  %v206 = vadd.s32 %v138, 4
  %v207 = vadd.s32 %v145, 4
  %v208 = vadd.s32 %v152, 4
  %v209 = vadd.s32 %v159, 4
  %v210 = vadd.s32 %v166, 4
  %v211 = vadd.s32 %v173, 4
  %v212 = vadd.s32 %v180, 4
  %v213 = vsel %vm197, %v205, %v131
  %v214 = vsel %vm198, %v206, %v138
  %v215 = vsel %vm199, %v207, %v145
  %v216 = vsel %vm200, %v208, %v152
  %v217 = vsel %vm201, %v209, %v159
  %v218 = vsel %vm202, %v210, %v166
  %v219 = vsel %vm203, %v211, %v173
  %v220 = vsel %vm204, %v212, %v180
  %vm221 = vcmp.lt.s32.totalorder %v32, 0
  %v222 = vsub.s32 0, %v32
  %v223 = vsel %vm221, %v222, %v32
  %v224 = vshrl.u32 %v223, 2
  %v225 = vand.u32 %v223, 3
  %v226 = vsub.s32 0, %v225
  %v227 = vsel %vm221, %v226, %v225
  %vm228 = vcmp.ne.s32.totalorder %v227, 0
  %vm229 = vcmp.lt.s32.totalorder %v227, 0
  %vm230 = vmand %vm229, %vm228
  %v231 = vadd.s32 %v227, 4
  %v232 = vsel %vm230, %v231, %v227
  %vm233 = vcmp.eq.s32.totalorder %v213, %v232
  %vm234 = vcmp.eq.s32.totalorder %v214, %v232
  %vm235 = vcmp.eq.s32.totalorder %v215, %v232
  %vm236 = vcmp.eq.s32.totalorder %v216, %v232
  %vm237 = vcmp.eq.s32.totalorder %v217, %v232
  %vm238 = vcmp.eq.s32.totalorder %v218, %v232
  %vm239 = vcmp.eq.s32.totalorder %v219, %v232
  %vm240 = vcmp.eq.s32.totalorder %v220, %v232
  %v241 = vsel %vm233, 1.0, 0.0
  %v242 = vsel %vm234, 1.0, 0.0
  %v243 = vsel %vm235, 1.0, 0.0
  %v244 = vsel %vm236, 1.0, 0.0
  %v245 = vsel %vm237, 1.0, 0.0
  %v246 = vsel %vm238, 1.0, 0.0
  %v247 = vsel %vm239, 1.0, 0.0
  %v248 = vsel %vm240, 1.0, 0.0
  %v249 = vld [vmem:[%s0] sm:$0xff]
  %v250 = vld [vmem:[%s0 + $0x8] sm:$0xff]
  %v251 = vld [vmem:[%s0 + $0x10] sm:$0xff]
  %v252 = vld [vmem:[%s0 + $0x18] sm:$0xff]
  %vm253 = vcmask 261120
  %v255 = vsel %vm253, %v97, 0
  %v258 = vsel %vm253, %v98, 0
  %v261 = vsel %vm253, %v99, 0
  %v264 = vsel %vm253, %v100, 0
  %266 = vmatprep.subr.mxu0 0.0
  %267 = vmatpush1.msra.mxu0 %v249
  %268 = vmatprep.subr.mxu0 0.0
  %269 = vmatpush1.msra.mxu0 %v250
  %270 = vmatprep.subr.mxu0 0.0
  %271 = vmatpush1.msra.mxu0 %v251
  %272 = vmatprep.subr.mxu0 0.0
  %273 = vmatpush1.msra.mxu0 %v252
  %274 = vmatprep.subr.mxu0 0.0
  %275 = vmatpush1.msra.mxu0 0.0
  %276 = vmatprep.subr.mxu0 0.0
  %277 = vmatpush1.msra.mxu0 0.0
  %278 = vmatprep.subr.mxu0 0.0
  %279 = vmatpush1.msra.mxu0 0.0
  %280 = vmatprep.subr.mxu0 0.0
  %281 = vmatpush1.msra.mxu0 0.0
  %282 = vmatprep.subr.mxu0 0.0
  %283 = vmatpush1.msra.mxu0 0.0
  %284 = vmatprep.subr.mxu0 0.0
  %285 = vmatpush1.msra.mxu0 0.0
  %286 = vmatprep.subr.mxu0 0.0
  %287 = vmatpush1.msra.mxu0 0.0
  %288 = vmatprep.subr.mxu0 0.0
  %289 = vmatpush1.msra.mxu0 0.0
  %290 = vmatprep.subr.mxu0 0.0
  %291 = vmatpush1.msra.mxu0 0.0
  %292 = vmatprep.subr.mxu0 0.0
  %293 = vmatpush1.msra.mxu0 0.0
  %294 = vmatprep.subr.mxu0 0.0
  %295 = vmatpush1.msra.mxu0 0.0
  %296 = vmatprep.subr.mxu0 0.0
  %297 = vmatpush1.msra.mxu0 0.0
  %298 = vmatprep.subr.mxu0 0.0
  %299 = vmatpush1.msra.mxu0 0.0
  %300 = vmatprep.subr.mxu0 0.0
  %301 = vmatpush1.msra.mxu0 0.0
  %302 = vmatprep.subr.mxu0 0.0
  %303 = vmatpush1.msra.mxu0 0.0
  %304 = vmatprep.subr.mxu0 0.0
  %305 = vmatpush1.msra.mxu0 0.0
  %306 = vmatprep.subr.mxu0 0.0
  %307 = vmatpush1.msra.mxu0 0.0
  %308 = vmatprep.subr.mxu0 0.0
  %309 = vmatpush1.msra.mxu0 0.0
  %310 = vmatprep.subr.mxu0 0.0
  %311 = vmatpush1.msra.mxu0 0.0
  %312 = vmatprep.subr.mxu0 0.0
  %313 = vmatpush1.msra.mxu0 0.0
  %314 = vmatprep.subr.mxu0 0.0
  %315 = vmatpush1.msra.mxu0 0.0
  %316 = vmatprep.subr.mxu0 0.0
  %317 = vmatpush1.msra.mxu0 0.0
  %318 = vmatprep.subr.mxu0 0.0
  %319 = vmatpush1.msra.mxu0 0.0
  %320 = vmatprep.subr.mxu0 0.0
  %321 = vmatpush1.msra.mxu0 0.0
  %322 = vmatprep.subr.mxu0 0.0
  %323 = vmatpush1.msra.mxu0 0.0
  %324 = vmatprep.subr.mxu0 0.0
  %325 = vmatpush1.msra.mxu0 0.0
  %326 = vmatprep.subr.mxu0 0.0
  %327 = vmatpush1.msra.mxu0 0.0
  %328 = vmatprep.subr.mxu0 0.0
  %329 = vmatpush1.msra.mxu0 0.0
  %330 = vmatprep.mubr.f32.mxu0 0.0
  %331 = vmatmul.mubr.f32.gmra.mrb[0].mxu0 %v255
  %v332 = vpop.f32.mrb[0].mxu0
  %v333 = vadd.f32 0.0, %v332
  %v334 = vpop.f32.mrb[0].mxu0
  %335 = vmatprep.mubr.f32.mxu0 0.0
  %336 = vmatmul.mubr.f32.gmra.mrb[0].mxu0 %v258
  %v337 = vpop.f32.mrb[0].mxu0
  %v338 = vadd.f32 0.0, %v337
  %v339 = vpop.f32.mrb[0].mxu0
  %340 = vmatprep.mubr.f32.mxu0 0.0
  %341 = vmatmul.mubr.f32.gmra.mrb[0].mxu0 %v261
  %v342 = vpop.f32.mrb[0].mxu0
  %v343 = vadd.f32 0.0, %v342
  %v344 = vpop.f32.mrb[0].mxu0
  %345 = vmatprep.mubr.f32.mxu0 0.0
  %346 = vmatmul.mubr.f32.gmra.mrb[0].mxu0 %v264
  %v347 = vpop.f32.mrb[0].mxu0
  %v348 = vadd.f32 0.0, %v347
  %v349 = vpop.f32.mrb[0].mxu0
  %350 = vdwg.mxu0
  %v352 = vsel %vm253, %v117, 0
  %v355 = vsel %vm253, %v118, 0
  %v358 = vsel %vm253, %v119, 0
  %v361 = vsel %vm253, %v120, 0
  %363 = vmatprep.subr.mxu0 0.0
  %364 = vmatpush1.msra.mxu0 %v249
  %365 = vmatprep.subr.mxu0 0.0
  %366 = vmatpush1.msra.mxu0 %v250
  %367 = vmatprep.subr.mxu0 0.0
  %368 = vmatpush1.msra.mxu0 %v251
  %369 = vmatprep.subr.mxu0 0.0
  %370 = vmatpush1.msra.mxu0 %v252
  %371 = vmatprep.subr.mxu0 0.0
  %372 = vmatpush1.msra.mxu0 0.0
  %373 = vmatprep.subr.mxu0 0.0
  %374 = vmatpush1.msra.mxu0 0.0
  %375 = vmatprep.subr.mxu0 0.0
  %376 = vmatpush1.msra.mxu0 0.0
  %377 = vmatprep.subr.mxu0 0.0
  %378 = vmatpush1.msra.mxu0 0.0
  %379 = vmatprep.subr.mxu0 0.0
  %380 = vmatpush1.msra.mxu0 0.0
  %381 = vmatprep.subr.mxu0 0.0
  %382 = vmatpush1.msra.mxu0 0.0
  %383 = vmatprep.subr.mxu0 0.0
  %384 = vmatpush1.msra.mxu0 0.0
  %385 = vmatprep.subr.mxu0 0.0
  %386 = vmatpush1.msra.mxu0 0.0
  %387 = vmatprep.subr.mxu0 0.0
  %388 = vmatpush1.msra.mxu0 0.0
  %389 = vmatprep.subr.mxu0 0.0
  %390 = vmatpush1.msra.mxu0 0.0
  %391 = vmatprep.subr.mxu0 0.0
  %392 = vmatpush1.msra.mxu0 0.0
  %393 = vmatprep.subr.mxu0 0.0
  %394 = vmatpush1.msra.mxu0 0.0
  %395 = vmatprep.subr.mxu0 0.0
  %396 = vmatpush1.msra.mxu0 0.0
  %397 = vmatprep.subr.mxu0 0.0
  %398 = vmatpush1.msra.mxu0 0.0
  %399 = vmatprep.subr.mxu0 0.0
  %400 = vmatpush1.msra.mxu0 0.0
  %401 = vmatprep.subr.mxu0 0.0
  %402 = vmatpush1.msra.mxu0 0.0
  %403 = vmatprep.subr.mxu0 0.0
  %404 = vmatpush1.msra.mxu0 0.0
  %405 = vmatprep.subr.mxu0 0.0
  %406 = vmatpush1.msra.mxu0 0.0
  %407 = vmatprep.subr.mxu0 0.0
  %408 = vmatpush1.msra.mxu0 0.0
  %409 = vmatprep.subr.mxu0 0.0
  %410 = vmatpush1.msra.mxu0 0.0
  %411 = vmatprep.subr.mxu0 0.0
  %412 = vmatpush1.msra.mxu0 0.0
  %413 = vmatprep.subr.mxu0 0.0
  %414 = vmatpush1.msra.mxu0 0.0
  %415 = vmatprep.subr.mxu0 0.0
  %416 = vmatpush1.msra.mxu0 0.0
  %417 = vmatprep.subr.mxu0 0.0
  %418 = vmatpush1.msra.mxu0 0.0
  %419 = vmatprep.subr.mxu0 0.0
  %420 = vmatpush1.msra.mxu0 0.0
  %421 = vmatprep.subr.mxu0 0.0
  %422 = vmatpush1.msra.mxu0 0.0
  %423 = vmatprep.subr.mxu0 0.0
  %424 = vmatpush1.msra.mxu0 0.0
  %425 = vmatprep.subr.mxu0 0.0
  %426 = vmatpush1.msra.mxu0 0.0
  %427 = vmatprep.mubr.f32.mxu0 0.0
  %428 = vmatmul.mubr.f32.gmra.mrb[0].mxu0 %v352
  %v429 = vpop.f32.mrb[0].mxu0
  %v430 = vadd.f32 0.0, %v429
  %v431 = vpop.f32.mrb[0].mxu0
  %432 = vmatprep.mubr.f32.mxu0 0.0
  %433 = vmatmul.mubr.f32.gmra.mrb[0].mxu0 %v355
  %v434 = vpop.f32.mrb[0].mxu0
  %v435 = vadd.f32 0.0, %v434
  %v436 = vpop.f32.mrb[0].mxu0
  %437 = vmatprep.mubr.f32.mxu0 0.0
  %438 = vmatmul.mubr.f32.gmra.mrb[0].mxu0 %v358
  %v439 = vpop.f32.mrb[0].mxu0
  %v440 = vadd.f32 0.0, %v439
  %v441 = vpop.f32.mrb[0].mxu0
  %442 = vmatprep.mubr.f32.mxu0 0.0
  %443 = vmatmul.mubr.f32.gmra.mrb[0].mxu0 %v361
  %v444 = vpop.f32.mrb[0].mxu0
  %v445 = vadd.f32 0.0, %v444
  %v446 = vpop.f32.mrb[0].mxu0
  %447 = vdwg.mxu0
  %s448 = scalar_lea.vmem %s1, 64
  %v449 = vld [vmem:[%s448] sm:$0xff]
  %v450 = vld [vmem:[%s448 + $0x8] sm:$0xff]
  %v451 = vld [vmem:[%s448 + $0x10] sm:$0xff]
  %v452 = vld [vmem:[%s448 + $0x18] sm:$0xff]
  %v453 = vld [vmem:[%s448 + $0x20] sm:$0xff]
  %v454 = vld [vmem:[%s448 + $0x28] sm:$0xff]
  %v455 = vld [vmem:[%s448 + $0x30] sm:$0xff]
  %v456 = vld [vmem:[%s448 + $0x38] sm:$0xff]
  %v457 = vld [vmem:[%s1] sm:$0xff]
  %v458 = vld [vmem:[%s1 + $0x8] sm:$0xff]
  %v459 = vld [vmem:[%s1 + $0x10] sm:$0xff]
  %v460 = vld [vmem:[%s1 + $0x18] sm:$0xff]
  %v461 = vld [vmem:[%s1 + $0x20] sm:$0xff]
  %v462 = vld [vmem:[%s1 + $0x28] sm:$0xff]
  %v463 = vld [vmem:[%s1 + $0x30] sm:$0xff]
  %v464 = vld [vmem:[%s1 + $0x38] sm:$0xff]
  %vm465 = vcmask 523264
  %v467 = vsel %vm465, %v333, 0
  %v470 = vsel %vm465, %v338, 0
  %v473 = vsel %vm465, %v343, 0
  %v476 = vsel %vm465, %v348, 0
  %478 = vmatprep.subr.mxu0 0.0
  %479 = vmatpush1.msra.mxu0 %v457
  %480 = vmatprep.subr.mxu0 0.0
  %481 = vmatpush1.msra.mxu0 %v458
  %482 = vmatprep.subr.mxu0 0.0
  %483 = vmatpush1.msra.mxu0 %v459
  %484 = vmatprep.subr.mxu0 0.0
  %485 = vmatpush1.msra.mxu0 %v460
  %486 = vmatprep.subr.mxu0 0.0
  %487 = vmatpush1.msra.mxu0 %v461
  %488 = vmatprep.subr.mxu0 0.0
  %489 = vmatpush1.msra.mxu0 %v462
  %490 = vmatprep.subr.mxu0 0.0
  %491 = vmatpush1.msra.mxu0 %v463
  %492 = vmatprep.subr.mxu0 0.0
  %493 = vmatpush1.msra.mxu0 %v464
  %494 = vmatprep.subr.mxu0 0.0
  %495 = vmatpush1.msra.mxu0 0.0
  %496 = vmatprep.subr.mxu0 0.0
  %497 = vmatpush1.msra.mxu0 0.0
  %498 = vmatprep.subr.mxu0 0.0
  %499 = vmatpush1.msra.mxu0 0.0
  %500 = vmatprep.subr.mxu0 0.0
  %501 = vmatpush1.msra.mxu0 0.0
  %502 = vmatprep.subr.mxu0 0.0
  %503 = vmatpush1.msra.mxu0 0.0
  %504 = vmatprep.subr.mxu0 0.0
  %505 = vmatpush1.msra.mxu0 0.0
  %506 = vmatprep.subr.mxu0 0.0
  %507 = vmatpush1.msra.mxu0 0.0
  %508 = vmatprep.subr.mxu0 0.0
  %509 = vmatpush1.msra.mxu0 0.0
  %510 = vmatprep.subr.mxu0 0.0
  %511 = vmatpush1.msra.mxu0 0.0
  %512 = vmatprep.subr.mxu0 0.0
  %513 = vmatpush1.msra.mxu0 0.0
  %514 = vmatprep.subr.mxu0 0.0
  %515 = vmatpush1.msra.mxu0 0.0
  %516 = vmatprep.subr.mxu0 0.0
  %517 = vmatpush1.msra.mxu0 0.0
  %518 = vmatprep.subr.mxu0 0.0
  %519 = vmatpush1.msra.mxu0 0.0
  %520 = vmatprep.subr.mxu0 0.0
  %521 = vmatpush1.msra.mxu0 0.0
  %522 = vmatprep.subr.mxu0 0.0
  %523 = vmatpush1.msra.mxu0 0.0
  %524 = vmatprep.subr.mxu0 0.0
  %525 = vmatpush1.msra.mxu0 0.0
  %526 = vmatprep.subr.mxu0 0.0
  %527 = vmatpush1.msra.mxu0 0.0
  %528 = vmatprep.subr.mxu0 0.0
  %529 = vmatpush1.msra.mxu0 0.0
  %530 = vmatprep.subr.mxu0 0.0
  %531 = vmatpush1.msra.mxu0 0.0
  %532 = vmatprep.subr.mxu0 0.0
  %533 = vmatpush1.msra.mxu0 0.0
  %534 = vmatprep.subr.mxu0 0.0
  %535 = vmatpush1.msra.mxu0 0.0
  %536 = vmatprep.subr.mxu0 0.0
  %537 = vmatpush1.msra.mxu0 0.0
  %538 = vmatprep.subr.mxu0 0.0
  %539 = vmatpush1.msra.mxu0 0.0
  %540 = vmatprep.subr.mxu0 0.0
  %541 = vmatpush1.msra.mxu0 0.0
  %542 = vmatprep.mubr.f32.mxu0 0.0
  %543 = vmatmul.mubr.f32.gmra.mrb[0].mxu0 %v467
  %v544 = vpop.f32.mrb[0].mxu0
  %v545 = vadd.f32 0.0, %v544
  %v546 = vpop.f32.mrb[0].mxu0
  %547 = vmatprep.mubr.f32.mxu0 0.0
  %548 = vmatmul.mubr.f32.gmra.mrb[0].mxu0 %v470
  %v549 = vpop.f32.mrb[0].mxu0
  %v550 = vadd.f32 0.0, %v549
  %v551 = vpop.f32.mrb[0].mxu0
  %552 = vmatprep.mubr.f32.mxu0 0.0
  %553 = vmatmul.mubr.f32.gmra.mrb[0].mxu0 %v473
  %v554 = vpop.f32.mrb[0].mxu0
  %v555 = vadd.f32 0.0, %v554
  %v556 = vpop.f32.mrb[0].mxu0
  %557 = vmatprep.mubr.f32.mxu0 0.0
  %558 = vmatmul.mubr.f32.gmra.mrb[0].mxu0 %v476
  %v559 = vpop.f32.mrb[0].mxu0
  %v560 = vadd.f32 0.0, %v559
  %v561 = vpop.f32.mrb[0].mxu0
  %562 = vdwg.mxu0
  %v564 = vsel %vm465, %v249, 0
  %v567 = vsel %vm465, %v250, 0
  %v570 = vsel %vm465, %v251, 0
  %v573 = vsel %vm465, %v252, 0
  %575 = vmatprep.subr.mxu0 0.0
  %576 = vmatpush1.msra.mxu0 %v449
  %577 = vmatprep.subr.mxu0 0.0
  %578 = vmatpush1.msra.mxu0 %v450
  %579 = vmatprep.subr.mxu0 0.0
  %580 = vmatpush1.msra.mxu0 %v451
  %581 = vmatprep.subr.mxu0 0.0
  %582 = vmatpush1.msra.mxu0 %v452
  %583 = vmatprep.subr.mxu0 0.0
  %584 = vmatpush1.msra.mxu0 %v453
  %585 = vmatprep.subr.mxu0 0.0
  %586 = vmatpush1.msra.mxu0 %v454
  %587 = vmatprep.subr.mxu0 0.0
  %588 = vmatpush1.msra.mxu0 %v455
  %589 = vmatprep.subr.mxu0 0.0
  %590 = vmatpush1.msra.mxu0 %v456
  %591 = vmatprep.subr.mxu0 0.0
  %592 = vmatpush1.msra.mxu0 0.0
  %593 = vmatprep.subr.mxu0 0.0
  %594 = vmatpush1.msra.mxu0 0.0
  %595 = vmatprep.subr.mxu0 0.0
  %596 = vmatpush1.msra.mxu0 0.0
  %597 = vmatprep.subr.mxu0 0.0
  %598 = vmatpush1.msra.mxu0 0.0
  %599 = vmatprep.subr.mxu0 0.0
  %600 = vmatpush1.msra.mxu0 0.0
  %601 = vmatprep.subr.mxu0 0.0
  %602 = vmatpush1.msra.mxu0 0.0
  %603 = vmatprep.subr.mxu0 0.0
  %604 = vmatpush1.msra.mxu0 0.0
  %605 = vmatprep.subr.mxu0 0.0
  %606 = vmatpush1.msra.mxu0 0.0
  %607 = vmatprep.subr.mxu0 0.0
  %608 = vmatpush1.msra.mxu0 0.0
  %609 = vmatprep.subr.mxu0 0.0
  %610 = vmatpush1.msra.mxu0 0.0
  %611 = vmatprep.subr.mxu0 0.0
  %612 = vmatpush1.msra.mxu0 0.0
  %613 = vmatprep.subr.mxu0 0.0
  %614 = vmatpush1.msra.mxu0 0.0
  %615 = vmatprep.subr.mxu0 0.0
  %616 = vmatpush1.msra.mxu0 0.0
  %617 = vmatprep.subr.mxu0 0.0
  %618 = vmatpush1.msra.mxu0 0.0
  %619 = vmatprep.subr.mxu0 0.0
  %620 = vmatpush1.msra.mxu0 0.0
  %621 = vmatprep.subr.mxu0 0.0
  %622 = vmatpush1.msra.mxu0 0.0
  %623 = vmatprep.subr.mxu0 0.0
  %624 = vmatpush1.msra.mxu0 0.0
  %625 = vmatprep.subr.mxu0 0.0
  %626 = vmatpush1.msra.mxu0 0.0
  %627 = vmatprep.subr.mxu0 0.0
  %628 = vmatpush1.msra.mxu0 0.0
  %629 = vmatprep.subr.mxu0 0.0
  %630 = vmatpush1.msra.mxu0 0.0
  %631 = vmatprep.subr.mxu0 0.0
  %632 = vmatpush1.msra.mxu0 0.0
  %633 = vmatprep.subr.mxu0 0.0
  %634 = vmatpush1.msra.mxu0 0.0
  %635 = vmatprep.subr.mxu0 0.0
  %636 = vmatpush1.msra.mxu0 0.0
  %637 = vmatprep.subr.mxu0 0.0
  %638 = vmatpush1.msra.mxu0 0.0
  %639 = vmatprep.mubr.f32.mxu0 0.0
  %640 = vmatmul.mubr.f32.gmra.mrb[0].mxu0 %v564
  %v641 = vpop.f32.mrb[0].mxu0
  %v642 = vadd.f32 %v545, %v641
  %v643 = vpop.f32.mrb[0].mxu0
  %644 = vmatprep.mubr.f32.mxu0 0.0
  %645 = vmatmul.mubr.f32.gmra.mrb[0].mxu0 %v567
  %v646 = vpop.f32.mrb[0].mxu0
  %v647 = vadd.f32 %v550, %v646
  %v648 = vpop.f32.mrb[0].mxu0
  %649 = vmatprep.mubr.f32.mxu0 0.0
  %650 = vmatmul.mubr.f32.gmra.mrb[0].mxu0 %v570
  %v651 = vpop.f32.mrb[0].mxu0
  %v652 = vadd.f32 %v555, %v651
  %v653 = vpop.f32.mrb[0].mxu0
  %654 = vmatprep.mubr.f32.mxu0 0.0
  %655 = vmatmul.mubr.f32.gmra.mrb[0].mxu0 %v573
  %v656 = vpop.f32.mrb[0].mxu0
  %v657 = vadd.f32 %v560, %v656
  %v658 = vpop.f32.mrb[0].mxu0
  %659 = vdwg.mxu0
  %s660 = scalar_lea.vmem %s1, 128
  %v661 = vld [vmem:[%s660] sm:$0xff]
  %v662 = vld [vmem:[%s660 + $0x8] sm:$0xff]
  %v663 = vld [vmem:[%s660 + $0x10] sm:$0xff]
  %v664 = vld [vmem:[%s660 + $0x18] sm:$0xff]
  %v665 = vld [vmem:[%s660 + $0x20] sm:$0xff]
  %v666 = vld [vmem:[%s660 + $0x28] sm:$0xff]
  %v667 = vld [vmem:[%s660 + $0x30] sm:$0xff]
  %v668 = vld [vmem:[%s660 + $0x38] sm:$0xff]
  %v670 = vsel %vm465, %v430, 0
  %v673 = vsel %vm465, %v435, 0
  %v676 = vsel %vm465, %v440, 0
  %v679 = vsel %vm465, %v445, 0
  %681 = vmatprep.subr.mxu0 0.0
  %682 = vmatpush1.msra.mxu0 %v661
  %683 = vmatprep.subr.mxu0 0.0
  %684 = vmatpush1.msra.mxu0 %v662
  %685 = vmatprep.subr.mxu0 0.0
  %686 = vmatpush1.msra.mxu0 %v663
  %687 = vmatprep.subr.mxu0 0.0
  %688 = vmatpush1.msra.mxu0 %v664
  %689 = vmatprep.subr.mxu0 0.0
  %690 = vmatpush1.msra.mxu0 %v665
  %691 = vmatprep.subr.mxu0 0.0
  %692 = vmatpush1.msra.mxu0 %v666
  %693 = vmatprep.subr.mxu0 0.0
  %694 = vmatpush1.msra.mxu0 %v667
  %695 = vmatprep.subr.mxu0 0.0
  %696 = vmatpush1.msra.mxu0 %v668
  %697 = vmatprep.subr.mxu0 0.0
  %698 = vmatpush1.msra.mxu0 0.0
  %699 = vmatprep.subr.mxu0 0.0
  %700 = vmatpush1.msra.mxu0 0.0
  %701 = vmatprep.subr.mxu0 0.0
  %702 = vmatpush1.msra.mxu0 0.0
  %703 = vmatprep.subr.mxu0 0.0
  %704 = vmatpush1.msra.mxu0 0.0
  %705 = vmatprep.subr.mxu0 0.0
  %706 = vmatpush1.msra.mxu0 0.0
  %707 = vmatprep.subr.mxu0 0.0
  %708 = vmatpush1.msra.mxu0 0.0
  %709 = vmatprep.subr.mxu0 0.0
  %710 = vmatpush1.msra.mxu0 0.0
  %711 = vmatprep.subr.mxu0 0.0
  %712 = vmatpush1.msra.mxu0 0.0
  %713 = vmatprep.subr.mxu0 0.0
  %714 = vmatpush1.msra.mxu0 0.0
  %715 = vmatprep.subr.mxu0 0.0
  %716 = vmatpush1.msra.mxu0 0.0
  %717 = vmatprep.subr.mxu0 0.0
  %718 = vmatpush1.msra.mxu0 0.0
  %719 = vmatprep.subr.mxu0 0.0
  %720 = vmatpush1.msra.mxu0 0.0
  %721 = vmatprep.subr.mxu0 0.0
  %722 = vmatpush1.msra.mxu0 0.0
  %723 = vmatprep.subr.mxu0 0.0
  %724 = vmatpush1.msra.mxu0 0.0
  %725 = vmatprep.subr.mxu0 0.0
  %726 = vmatpush1.msra.mxu0 0.0
  %727 = vmatprep.subr.mxu0 0.0
  %728 = vmatpush1.msra.mxu0 0.0
  %729 = vmatprep.subr.mxu0 0.0
  %730 = vmatpush1.msra.mxu0 0.0
  %731 = vmatprep.subr.mxu0 0.0
  %732 = vmatpush1.msra.mxu0 0.0
  %733 = vmatprep.subr.mxu0 0.0
  %734 = vmatpush1.msra.mxu0 0.0
  %735 = vmatprep.subr.mxu0 0.0
  %736 = vmatpush1.msra.mxu0 0.0
  %737 = vmatprep.subr.mxu0 0.0
  %738 = vmatpush1.msra.mxu0 0.0
  %739 = vmatprep.subr.mxu0 0.0
  %740 = vmatpush1.msra.mxu0 0.0
  %741 = vmatprep.subr.mxu0 0.0
  %742 = vmatpush1.msra.mxu0 0.0
  %743 = vmatprep.subr.mxu0 0.0
  %744 = vmatpush1.msra.mxu0 0.0
  %745 = vmatprep.mubr.f32.mxu0 0.0
  %746 = vmatmul.mubr.f32.gmra.mrb[0].mxu0 %v670
  %v747 = vpop.f32.mrb[0].mxu0
  %v748 = vadd.f32 0.0, %v747
  %v749 = vpop.f32.mrb[0].mxu0
  %750 = vmatprep.mubr.f32.mxu0 0.0
  %751 = vmatmul.mubr.f32.gmra.mrb[0].mxu0 %v673
  %v752 = vpop.f32.mrb[0].mxu0
  %v753 = vadd.f32 0.0, %v752
  %v754 = vpop.f32.mrb[0].mxu0
  %755 = vmatprep.mubr.f32.mxu0 0.0
  %756 = vmatmul.mubr.f32.gmra.mrb[0].mxu0 %v676
  %v757 = vpop.f32.mrb[0].mxu0
  %v758 = vadd.f32 0.0, %v757
  %v759 = vpop.f32.mrb[0].mxu0
  %760 = vmatprep.mubr.f32.mxu0 0.0
  %761 = vmatmul.mubr.f32.gmra.mrb[0].mxu0 %v679
  %v762 = vpop.f32.mrb[0].mxu0
  %v763 = vadd.f32 0.0, %v762
  %v764 = vpop.f32.mrb[0].mxu0
  %765 = vdwg.mxu0
  %v766 = vadd.f32 %v642, %v748
  %v767 = vadd.f32 %v647, %v753
  %v768 = vadd.f32 %v652, %v758
  %v769 = vadd.f32 %v657, %v763
  %v771 = vsel %vm465, %v766, 0
  %v774 = vsel %vm465, %v767, 0
  %v777 = vsel %vm465, %v768, 0
  %v780 = vsel %vm465, %v769, 0
  %782 = vmatprep.subr.mxu0 0.0
  %783 = vmatpush1.msra.mxu0 %v241
  %784 = vmatprep.subr.mxu0 0.0
  %785 = vmatpush1.msra.mxu0 %v242
  %786 = vmatprep.subr.mxu0 0.0
  %787 = vmatpush1.msra.mxu0 %v243
  %788 = vmatprep.subr.mxu0 0.0
  %789 = vmatpush1.msra.mxu0 %v244
  %790 = vmatprep.subr.mxu0 0.0
  %791 = vmatpush1.msra.mxu0 %v245
  %792 = vmatprep.subr.mxu0 0.0
  %793 = vmatpush1.msra.mxu0 %v246
  %794 = vmatprep.subr.mxu0 0.0
  %795 = vmatpush1.msra.mxu0 %v247
  %796 = vmatprep.subr.mxu0 0.0
  %797 = vmatpush1.msra.mxu0 %v248
  %798 = vmatprep.subr.mxu0 0.0
  %799 = vmatpush1.msra.mxu0 0.0
  %800 = vmatprep.subr.mxu0 0.0
  %801 = vmatpush1.msra.mxu0 0.0
  %802 = vmatprep.subr.mxu0 0.0
  %803 = vmatpush1.msra.mxu0 0.0
  %804 = vmatprep.subr.mxu0 0.0
  %805 = vmatpush1.msra.mxu0 0.0
  %806 = vmatprep.subr.mxu0 0.0
  %807 = vmatpush1.msra.mxu0 0.0
  %808 = vmatprep.subr.mxu0 0.0
  %809 = vmatpush1.msra.mxu0 0.0
  %810 = vmatprep.subr.mxu0 0.0
  %811 = vmatpush1.msra.mxu0 0.0
  %812 = vmatprep.subr.mxu0 0.0
  %813 = vmatpush1.msra.mxu0 0.0
  %814 = vmatprep.subr.mxu0 0.0
  %815 = vmatpush1.msra.mxu0 0.0
  %816 = vmatprep.subr.mxu0 0.0
  %817 = vmatpush1.msra.mxu0 0.0
  %818 = vmatprep.subr.mxu0 0.0
  %819 = vmatpush1.msra.mxu0 0.0
  %820 = vmatprep.subr.mxu0 0.0
  %821 = vmatpush1.msra.mxu0 0.0
  %822 = vmatprep.subr.mxu0 0.0
  %823 = vmatpush1.msra.mxu0 0.0
  %824 = vmatprep.subr.mxu0 0.0
  %825 = vmatpush1.msra.mxu0 0.0
  %826 = vmatprep.subr.mxu0 0.0
  %827 = vmatpush1.msra.mxu0 0.0
  %828 = vmatprep.subr.mxu0 0.0
  %829 = vmatpush1.msra.mxu0 0.0
  %830 = vmatprep.subr.mxu0 0.0
  %831 = vmatpush1.msra.mxu0 0.0
  %832 = vmatprep.subr.mxu0 0.0
  %833 = vmatpush1.msra.mxu0 0.0
  %834 = vmatprep.subr.mxu0 0.0
  %835 = vmatpush1.msra.mxu0 0.0
  %836 = vmatprep.subr.mxu0 0.0
  %837 = vmatpush1.msra.mxu0 0.0
  %838 = vmatprep.subr.mxu0 0.0
  %839 = vmatpush1.msra.mxu0 0.0
  %840 = vmatprep.subr.mxu0 0.0
  %841 = vmatpush1.msra.mxu0 0.0
  %842 = vmatprep.subr.mxu0 0.0
  %843 = vmatpush1.msra.mxu0 0.0
  %844 = vmatprep.subr.mxu0 0.0
  %845 = vmatpush1.msra.mxu0 0.0
  %846 = vmatprep.mubr.f32.mxu0 0.0
  %847 = vmatmul.mubr.f32.gmra.mrb[0].mxu0 %v771
  %v848 = vpop.f32.mrb[0].mxu0
  %v849 = vadd.f32 0.0, %v848
  %v850 = vpop.f32.mrb[0].mxu0
  %851 = vmatprep.mubr.f32.mxu0 0.0
  %852 = vmatmul.mubr.f32.gmra.mrb[0].mxu0 %v774
  %v853 = vpop.f32.mrb[0].mxu0
  %v854 = vadd.f32 0.0, %v853
  %v855 = vpop.f32.mrb[0].mxu0
  %856 = vmatprep.mubr.f32.mxu0 0.0
  %857 = vmatmul.mubr.f32.gmra.mrb[0].mxu0 %v777
  %v858 = vpop.f32.mrb[0].mxu0
  %v859 = vadd.f32 0.0, %v858
  %v860 = vpop.f32.mrb[0].mxu0
  %861 = vmatprep.mubr.f32.mxu0 0.0
  %862 = vmatmul.mubr.f32.gmra.mrb[0].mxu0 %v780
  %v863 = vpop.f32.mrb[0].mxu0
  %v864 = vadd.f32 0.0, %v863
  %v865 = vpop.f32.mrb[0].mxu0
  %866 = vdwg.mxu0
  %v867 = vsel %vm465, %v849, 0.0
  %v868 = vsel %vm465, %v854, 0.0
  %v869 = vadd.f32 %v867, %v868
  %v870 = vsel %vm465, %v859, 0.0
  %v871 = vadd.f32 %v869, %v870
  %v872 = vsel %vm465, %v864, 0.0
  %v873 = vadd.f32 %v871, %v872
  %v874 = vrot.slane %v873, 4
  %v875 = vadd.f32 %v873, %v874
  %v876 = vrot.slane %v875, 2
  %v877 = vadd.f32 %v875, %v876
  %v878 = vrot.slane %v877, 1
  %v879 = vadd.f32 %v877, %v878
  %v880 = vmul.f32 %v766, %v766
  %v881 = vmul.f32 %v767, %v767
  %v882 = vmul.f32 %v768, %v768
  %v883 = vmul.f32 %v769, %v769
  %v885 = vsel %vm465, %v880, 0
  %v888 = vsel %vm465, %v881, 0
  %v891 = vsel %vm465, %v882, 0
  %v894 = vsel %vm465, %v883, 0
  %896 = vmatprep.subr.mxu0 0.0
  %897 = vmatpush1.msra.mxu0 %v241
  %898 = vmatprep.subr.mxu0 0.0
  %899 = vmatpush1.msra.mxu0 %v242
  %900 = vmatprep.subr.mxu0 0.0
  %901 = vmatpush1.msra.mxu0 %v243
  %902 = vmatprep.subr.mxu0 0.0
  %903 = vmatpush1.msra.mxu0 %v244
  %904 = vmatprep.subr.mxu0 0.0
  %905 = vmatpush1.msra.mxu0 %v245
  %906 = vmatprep.subr.mxu0 0.0
  %907 = vmatpush1.msra.mxu0 %v246
  %908 = vmatprep.subr.mxu0 0.0
  %909 = vmatpush1.msra.mxu0 %v247
  %910 = vmatprep.subr.mxu0 0.0
  %911 = vmatpush1.msra.mxu0 %v248
  %912 = vmatprep.subr.mxu0 0.0
  %913 = vmatpush1.msra.mxu0 0.0
  %914 = vmatprep.subr.mxu0 0.0
  %915 = vmatpush1.msra.mxu0 0.0
  %916 = vmatprep.subr.mxu0 0.0
  %917 = vmatpush1.msra.mxu0 0.0
  %918 = vmatprep.subr.mxu0 0.0
  %919 = vmatpush1.msra.mxu0 0.0
  %920 = vmatprep.subr.mxu0 0.0
  %921 = vmatpush1.msra.mxu0 0.0
  %922 = vmatprep.subr.mxu0 0.0
  %923 = vmatpush1.msra.mxu0 0.0
  %924 = vmatprep.subr.mxu0 0.0
  %925 = vmatpush1.msra.mxu0 0.0
  %926 = vmatprep.subr.mxu0 0.0
  %927 = vmatpush1.msra.mxu0 0.0
  %928 = vmatprep.subr.mxu0 0.0
  %929 = vmatpush1.msra.mxu0 0.0
  %930 = vmatprep.subr.mxu0 0.0
  %931 = vmatpush1.msra.mxu0 0.0
  %932 = vmatprep.subr.mxu0 0.0
  %933 = vmatpush1.msra.mxu0 0.0
  %934 = vmatprep.subr.mxu0 0.0
  %935 = vmatpush1.msra.mxu0 0.0
  %936 = vmatprep.subr.mxu0 0.0
  %937 = vmatpush1.msra.mxu0 0.0
  %938 = vmatprep.subr.mxu0 0.0
  %939 = vmatpush1.msra.mxu0 0.0
  %940 = vmatprep.subr.mxu0 0.0
  %941 = vmatpush1.msra.mxu0 0.0
  %942 = vmatprep.subr.mxu0 0.0
  %943 = vmatpush1.msra.mxu0 0.0
  %944 = vmatprep.subr.mxu0 0.0
  %945 = vmatpush1.msra.mxu0 0.0
  %946 = vmatprep.subr.mxu0 0.0
  %947 = vmatpush1.msra.mxu0 0.0
  %948 = vmatprep.subr.mxu0 0.0
  %949 = vmatpush1.msra.mxu0 0.0
  %950 = vmatprep.subr.mxu0 0.0
  %951 = vmatpush1.msra.mxu0 0.0
  %952 = vmatprep.subr.mxu0 0.0
  %953 = vmatpush1.msra.mxu0 0.0
  %954 = vmatprep.subr.mxu0 0.0
  %955 = vmatpush1.msra.mxu0 0.0
  %956 = vmatprep.subr.mxu0 0.0
  %957 = vmatpush1.msra.mxu0 0.0
  %958 = vmatprep.subr.mxu0 0.0
  %959 = vmatpush1.msra.mxu0 0.0
  %960 = vmatprep.mubr.f32.mxu0 0.0
  %961 = vmatmul.mubr.f32.gmra.mrb[0].mxu0 %v885
  %v962 = vpop.f32.mrb[0].mxu0
  %v963 = vadd.f32 0.0, %v962
  %v964 = vpop.f32.mrb[0].mxu0
  %965 = vmatprep.mubr.f32.mxu0 0.0
  %966 = vmatmul.mubr.f32.gmra.mrb[0].mxu0 %v888
  %v967 = vpop.f32.mrb[0].mxu0
  %v968 = vadd.f32 0.0, %v967
  %v969 = vpop.f32.mrb[0].mxu0
  %970 = vmatprep.mubr.f32.mxu0 0.0
  %971 = vmatmul.mubr.f32.gmra.mrb[0].mxu0 %v891
  %v972 = vpop.f32.mrb[0].mxu0
  %v973 = vadd.f32 0.0, %v972
  %v974 = vpop.f32.mrb[0].mxu0
  %975 = vmatprep.mubr.f32.mxu0 0.0
  %976 = vmatmul.mubr.f32.gmra.mrb[0].mxu0 %v894
  %v977 = vpop.f32.mrb[0].mxu0
  %v978 = vadd.f32 0.0, %v977
  %v979 = vpop.f32.mrb[0].mxu0
  %980 = vdwg.mxu0
  %v981 = vsel %vm465, %v963, 0.0
  %v982 = vsel %vm465, %v968, 0.0
  %v983 = vadd.f32 %v981, %v982
  %v984 = vsel %vm465, %v973, 0.0
  %v985 = vadd.f32 %v983, %v984
  %v986 = vsel %vm465, %v978, 0.0
  %v987 = vadd.f32 %v985, %v986
  %v988 = vrot.slane %v987, 4
  %v989 = vadd.f32 %v987, %v988
  %v990 = vrot.slane %v989, 2
  %v991 = vadd.f32 %v989, %v990
  %v992 = vrot.slane %v991, 1
  %v993 = vadd.f32 %v991, %v992
  %v994 = vmul.f32 %v879, 0.001953125
  %v995 = vmul.f32 %v993, 0.001953125
  %v996 = vmul.f32 %v994, %v994
  %v997 = vsub.f32 %v995, %v996
  %v998 = vld [vmem:[%s3] sm:$0x1]
  %v999 = vadd.f32 %v997, 1e-05
  %v1000 = vrsqrt.pop %v999
  %v1001 = vmul.f32 %v998, %v1000
  %v1002 = vld [vmem:[%s4] sm:$0x1]
  %v1003 = vmul.f32 %v994, %v1001
  %v1004 = vsub.f32 %v1002, %v1003
  %v1006 = vlaneseq
  %v1007 = vshrl.u32 %v1006, 7
  %v1008 = vsub.s32 0, %v1007
  %v1009 = vrot.slane %v1001, %v1008
  %v1011 = vmul.f32 %v766, %v1009
  %v1012 = vmul.f32 %v767, %v1009
  %v1013 = vmul.f32 %v768, %v1009
  %v1014 = vmul.f32 %v769, %v1009
  %v1016 = vlaneseq
  %v1017 = vshrl.u32 %v1016, 7
  %v1018 = vsub.s32 0, %v1017
  %v1019 = vrot.slane %v1004, %v1018
  %v1021 = vadd.f32 %v1011, %v1019
  %v1022 = vadd.f32 %v1012, %v1019
  %v1023 = vadd.f32 %v1013, %v1019
  %v1024 = vadd.f32 %v1014, %v1019
  %v1025 = vmax.f32 %v1021, 0.0
  %v1026 = vmax.f32 %v1022, 0.0
  %v1027 = vmax.f32 %v1023, 0.0
  %v1028 = vmax.f32 %v1024, 0.0
  %1029 = vmatprep.subr.mxu0 0.0
  %1030 = vmatpush1.msra.mxu0 %v1025
  %1031 = vmatprep.subr.mxu0 0.0
  %1032 = vmatpush1.msra.mxu0 %v1026
  %1033 = vmatprep.subr.mxu0 0.0
  %1034 = vmatpush1.msra.mxu0 %v1027
  %1035 = vmatprep.subr.mxu0 0.0
  %1036 = vmatpush1.msra.mxu0 %v1028
  %1037 = vmatprep.subr.mxu0 0.0
  %1038 = vmatpush1.msra.mxu0 0.0
  %1039 = vmatprep.subr.mxu0 0.0
  %1040 = vmatpush1.msra.mxu0 0.0
  %1041 = vmatprep.subr.mxu0 0.0
  %1042 = vmatpush1.msra.mxu0 0.0
  %1043 = vmatprep.subr.mxu0 0.0
  %1044 = vmatpush1.msra.mxu0 0.0
  %1045 = vmatprep.subr.mxu0 0.0
  %1046 = vmatpush1.msra.mxu0 0.0
  %1047 = vmatprep.subr.mxu0 0.0
  %1048 = vmatpush1.msra.mxu0 0.0
  %1049 = vmatprep.subr.mxu0 0.0
  %1050 = vmatpush1.msra.mxu0 0.0
  %1051 = vmatprep.subr.mxu0 0.0
  %1052 = vmatpush1.msra.mxu0 0.0
  %1053 = vmatprep.subr.mxu0 0.0
  %1054 = vmatpush1.msra.mxu0 0.0
  %1055 = vmatprep.subr.mxu0 0.0
  %1056 = vmatpush1.msra.mxu0 0.0
  %1057 = vmatprep.subr.mxu0 0.0
  %1058 = vmatpush1.msra.mxu0 0.0
  %1059 = vmatprep.subr.mxu0 0.0
  %1060 = vmatpush1.msra.mxu0 0.0
  %1061 = vmatprep.subr.mxu0 0.0
  %1062 = vmatpush1.msra.mxu0 0.0
  %1063 = vmatprep.subr.mxu0 0.0
  %1064 = vmatpush1.msra.mxu0 0.0
  %1065 = vmatprep.subr.mxu0 0.0
  %1066 = vmatpush1.msra.mxu0 0.0
  %1067 = vmatprep.subr.mxu0 0.0
  %1068 = vmatpush1.msra.mxu0 0.0
  %1069 = vmatprep.subr.mxu0 0.0
  %1070 = vmatpush1.msra.mxu0 0.0
  %1071 = vmatprep.subr.mxu0 0.0
  %1072 = vmatpush1.msra.mxu0 0.0
  %1073 = vmatprep.subr.mxu0 0.0
  %1074 = vmatpush1.msra.mxu0 0.0
  %1075 = vmatprep.subr.mxu0 0.0
  %1076 = vmatpush1.msra.mxu0 0.0
  %1077 = vmatprep.subr.mxu0 0.0
  %1078 = vmatpush1.msra.mxu0 0.0
  %1079 = vmatprep.subr.mxu0 0.0
  %1080 = vmatpush1.msra.mxu0 0.0
  %1081 = vmatprep.subr.mxu0 0.0
  %1082 = vmatpush1.msra.mxu0 0.0
  %1083 = vmatprep.subr.mxu0 0.0
  %1084 = vmatpush1.msra.mxu0 0.0
  %1085 = vmatprep.subr.mxu0 0.0
  %1086 = vmatpush1.msra.mxu0 0.0
  %1087 = vmatprep.subr.mxu0 0.0
  %1088 = vmatpush1.msra.mxu0 0.0
  %1089 = vmatprep.subr.mxu0 0.0
  %1090 = vmatpush1.msra.mxu0 0.0
  %1091 = vmatprep.subr.mxu0 0.0
  %1092 = vmatpush1.msra.mxu0 0.0
  %1093 = vmatprep.mubr.f32.mxu0 0.0
  %1094 = vmatmul.mubr.f32.gmra.mrb[0].mxu0 %v255
  %v1095 = vpop.f32.mrb[0].mxu0
  %v1096 = vadd.f32 0.0, %v1095
  %v1097 = vpop.f32.mrb[0].mxu0
  %1098 = vmatprep.mubr.f32.mxu0 0.0
  %1099 = vmatmul.mubr.f32.gmra.mrb[0].mxu0 %v258
  %v1100 = vpop.f32.mrb[0].mxu0
  %v1101 = vadd.f32 0.0, %v1100
  %v1102 = vpop.f32.mrb[0].mxu0
  %1103 = vmatprep.mubr.f32.mxu0 0.0
  %1104 = vmatmul.mubr.f32.gmra.mrb[0].mxu0 %v261
  %v1105 = vpop.f32.mrb[0].mxu0
  %v1106 = vadd.f32 0.0, %v1105
  %v1107 = vpop.f32.mrb[0].mxu0
  %1108 = vmatprep.mubr.f32.mxu0 0.0
  %1109 = vmatmul.mubr.f32.gmra.mrb[0].mxu0 %v264
  %v1110 = vpop.f32.mrb[0].mxu0
  %v1111 = vadd.f32 0.0, %v1110
  %v1112 = vpop.f32.mrb[0].mxu0
  %1113 = vdwg.mxu0
  %1114 = vmatprep.subr.mxu0 0.0
  %1115 = vmatpush1.msra.mxu0 %v1025
  %1116 = vmatprep.subr.mxu0 0.0
  %1117 = vmatpush1.msra.mxu0 %v1026
  %1118 = vmatprep.subr.mxu0 0.0
  %1119 = vmatpush1.msra.mxu0 %v1027
  %1120 = vmatprep.subr.mxu0 0.0
  %1121 = vmatpush1.msra.mxu0 %v1028
  %1122 = vmatprep.subr.mxu0 0.0
  %1123 = vmatpush1.msra.mxu0 0.0
  %1124 = vmatprep.subr.mxu0 0.0
  %1125 = vmatpush1.msra.mxu0 0.0
  %1126 = vmatprep.subr.mxu0 0.0
  %1127 = vmatpush1.msra.mxu0 0.0
  %1128 = vmatprep.subr.mxu0 0.0
  %1129 = vmatpush1.msra.mxu0 0.0
  %1130 = vmatprep.subr.mxu0 0.0
  %1131 = vmatpush1.msra.mxu0 0.0
  %1132 = vmatprep.subr.mxu0 0.0
  %1133 = vmatpush1.msra.mxu0 0.0
  %1134 = vmatprep.subr.mxu0 0.0
  %1135 = vmatpush1.msra.mxu0 0.0
  %1136 = vmatprep.subr.mxu0 0.0
  %1137 = vmatpush1.msra.mxu0 0.0
  %1138 = vmatprep.subr.mxu0 0.0
  %1139 = vmatpush1.msra.mxu0 0.0
  %1140 = vmatprep.subr.mxu0 0.0
  %1141 = vmatpush1.msra.mxu0 0.0
  %1142 = vmatprep.subr.mxu0 0.0
  %1143 = vmatpush1.msra.mxu0 0.0
  %1144 = vmatprep.subr.mxu0 0.0
  %1145 = vmatpush1.msra.mxu0 0.0
  %1146 = vmatprep.subr.mxu0 0.0
  %1147 = vmatpush1.msra.mxu0 0.0
  %1148 = vmatprep.subr.mxu0 0.0
  %1149 = vmatpush1.msra.mxu0 0.0
  %1150 = vmatprep.subr.mxu0 0.0
  %1151 = vmatpush1.msra.mxu0 0.0
  %1152 = vmatprep.subr.mxu0 0.0
  %1153 = vmatpush1.msra.mxu0 0.0
  %1154 = vmatprep.subr.mxu0 0.0
  %1155 = vmatpush1.msra.mxu0 0.0
  %1156 = vmatprep.subr.mxu0 0.0
  %1157 = vmatpush1.msra.mxu0 0.0
  %1158 = vmatprep.subr.mxu0 0.0
  %1159 = vmatpush1.msra.mxu0 0.0
  %1160 = vmatprep.subr.mxu0 0.0
  %1161 = vmatpush1.msra.mxu0 0.0
  %1162 = vmatprep.subr.mxu0 0.0
  %1163 = vmatpush1.msra.mxu0 0.0
  %1164 = vmatprep.subr.mxu0 0.0
  %1165 = vmatpush1.msra.mxu0 0.0
  %1166 = vmatprep.subr.mxu0 0.0
  %1167 = vmatpush1.msra.mxu0 0.0
  %1168 = vmatprep.subr.mxu0 0.0
  %1169 = vmatpush1.msra.mxu0 0.0
  %1170 = vmatprep.subr.mxu0 0.0
  %1171 = vmatpush1.msra.mxu0 0.0
  %1172 = vmatprep.subr.mxu0 0.0
  %1173 = vmatpush1.msra.mxu0 0.0
  %1174 = vmatprep.subr.mxu0 0.0
  %1175 = vmatpush1.msra.mxu0 0.0
  %1176 = vmatprep.subr.mxu0 0.0
  %1177 = vmatpush1.msra.mxu0 0.0
  %1178 = vmatprep.mubr.f32.mxu0 0.0
  %1179 = vmatmul.mubr.f32.gmra.mrb[0].mxu0 %v352
  %v1180 = vpop.f32.mrb[0].mxu0
  %v1181 = vadd.f32 0.0, %v1180
  %v1182 = vpop.f32.mrb[0].mxu0
  %1183 = vmatprep.mubr.f32.mxu0 0.0
  %1184 = vmatmul.mubr.f32.gmra.mrb[0].mxu0 %v355
  %v1185 = vpop.f32.mrb[0].mxu0
  %v1186 = vadd.f32 0.0, %v1185
  %v1187 = vpop.f32.mrb[0].mxu0
  %1188 = vmatprep.mubr.f32.mxu0 0.0
  %1189 = vmatmul.mubr.f32.gmra.mrb[0].mxu0 %v358
  %v1190 = vpop.f32.mrb[0].mxu0
  %v1191 = vadd.f32 0.0, %v1190
  %v1192 = vpop.f32.mrb[0].mxu0
  %1193 = vmatprep.mubr.f32.mxu0 0.0
  %1194 = vmatmul.mubr.f32.gmra.mrb[0].mxu0 %v361
  %v1195 = vpop.f32.mrb[0].mxu0
  %v1196 = vadd.f32 0.0, %v1195
  %v1197 = vpop.f32.mrb[0].mxu0
  %1198 = vdwg.mxu0
  %s1199 = scalar_lea.vmem %s2, 64
  %v1200 = vld [vmem:[%s1199] sm:$0xff]
  %v1201 = vld [vmem:[%s1199 + $0x8] sm:$0xff]
  %v1202 = vld [vmem:[%s1199 + $0x10] sm:$0xff]
  %v1203 = vld [vmem:[%s1199 + $0x18] sm:$0xff]
  %v1204 = vld [vmem:[%s1199 + $0x20] sm:$0xff]
  %v1205 = vld [vmem:[%s1199 + $0x28] sm:$0xff]
  %v1206 = vld [vmem:[%s1199 + $0x30] sm:$0xff]
  %v1207 = vld [vmem:[%s1199 + $0x38] sm:$0xff]
  %v1208 = vld [vmem:[%s2] sm:$0xff]
  %v1209 = vld [vmem:[%s2 + $0x8] sm:$0xff]
  %v1210 = vld [vmem:[%s2 + $0x10] sm:$0xff]
  %v1211 = vld [vmem:[%s2 + $0x18] sm:$0xff]
  %v1212 = vld [vmem:[%s2 + $0x20] sm:$0xff]
  %v1213 = vld [vmem:[%s2 + $0x28] sm:$0xff]
  %v1214 = vld [vmem:[%s2 + $0x30] sm:$0xff]
  %v1215 = vld [vmem:[%s2 + $0x38] sm:$0xff]
  %v1217 = vsel %vm465, %v1096, 0
  %v1220 = vsel %vm465, %v1101, 0
  %v1223 = vsel %vm465, %v1106, 0
  %v1226 = vsel %vm465, %v1111, 0
  %1228 = vmatprep.subr.mxu0 0.0
  %1229 = vmatpush1.msra.mxu0 %v1208
  %1230 = vmatprep.subr.mxu0 0.0
  %1231 = vmatpush1.msra.mxu0 %v1209
  %1232 = vmatprep.subr.mxu0 0.0
  %1233 = vmatpush1.msra.mxu0 %v1210
  %1234 = vmatprep.subr.mxu0 0.0
  %1235 = vmatpush1.msra.mxu0 %v1211
  %1236 = vmatprep.subr.mxu0 0.0
  %1237 = vmatpush1.msra.mxu0 %v1212
  %1238 = vmatprep.subr.mxu0 0.0
  %1239 = vmatpush1.msra.mxu0 %v1213
  %1240 = vmatprep.subr.mxu0 0.0
  %1241 = vmatpush1.msra.mxu0 %v1214
  %1242 = vmatprep.subr.mxu0 0.0
  %1243 = vmatpush1.msra.mxu0 %v1215
  %1244 = vmatprep.subr.mxu0 0.0
  %1245 = vmatpush1.msra.mxu0 0.0
  %1246 = vmatprep.subr.mxu0 0.0
  %1247 = vmatpush1.msra.mxu0 0.0
  %1248 = vmatprep.subr.mxu0 0.0
  %1249 = vmatpush1.msra.mxu0 0.0
  %1250 = vmatprep.subr.mxu0 0.0
  %1251 = vmatpush1.msra.mxu0 0.0
  %1252 = vmatprep.subr.mxu0 0.0
  %1253 = vmatpush1.msra.mxu0 0.0
  %1254 = vmatprep.subr.mxu0 0.0
  %1255 = vmatpush1.msra.mxu0 0.0
  %1256 = vmatprep.subr.mxu0 0.0
  %1257 = vmatpush1.msra.mxu0 0.0
  %1258 = vmatprep.subr.mxu0 0.0
  %1259 = vmatpush1.msra.mxu0 0.0
  %1260 = vmatprep.subr.mxu0 0.0
  %1261 = vmatpush1.msra.mxu0 0.0
  %1262 = vmatprep.subr.mxu0 0.0
  %1263 = vmatpush1.msra.mxu0 0.0
  %1264 = vmatprep.subr.mxu0 0.0
  %1265 = vmatpush1.msra.mxu0 0.0
  %1266 = vmatprep.subr.mxu0 0.0
  %1267 = vmatpush1.msra.mxu0 0.0
  %1268 = vmatprep.subr.mxu0 0.0
  %1269 = vmatpush1.msra.mxu0 0.0
  %1270 = vmatprep.subr.mxu0 0.0
  %1271 = vmatpush1.msra.mxu0 0.0
  %1272 = vmatprep.subr.mxu0 0.0
  %1273 = vmatpush1.msra.mxu0 0.0
  %1274 = vmatprep.subr.mxu0 0.0
  %1275 = vmatpush1.msra.mxu0 0.0
  %1276 = vmatprep.subr.mxu0 0.0
  %1277 = vmatpush1.msra.mxu0 0.0
  %1278 = vmatprep.subr.mxu0 0.0
  %1279 = vmatpush1.msra.mxu0 0.0
  %1280 = vmatprep.subr.mxu0 0.0
  %1281 = vmatpush1.msra.mxu0 0.0
  %1282 = vmatprep.subr.mxu0 0.0
  %1283 = vmatpush1.msra.mxu0 0.0
  %1284 = vmatprep.subr.mxu0 0.0
  %1285 = vmatpush1.msra.mxu0 0.0
  %1286 = vmatprep.subr.mxu0 0.0
  %1287 = vmatpush1.msra.mxu0 0.0
  %1288 = vmatprep.subr.mxu0 0.0
  %1289 = vmatpush1.msra.mxu0 0.0
  %1290 = vmatprep.subr.mxu0 0.0
  %1291 = vmatpush1.msra.mxu0 0.0
  %1292 = vmatprep.mubr.f32.mxu0 0.0
  %1293 = vmatmul.mubr.f32.gmra.mrb[0].mxu0 %v1217
  %v1294 = vpop.f32.mrb[0].mxu0
  %v1295 = vadd.f32 0.0, %v1294
  %v1296 = vpop.f32.mrb[0].mxu0
  %1297 = vmatprep.mubr.f32.mxu0 0.0
  %1298 = vmatmul.mubr.f32.gmra.mrb[0].mxu0 %v1220
  %v1299 = vpop.f32.mrb[0].mxu0
  %v1300 = vadd.f32 0.0, %v1299
  %v1301 = vpop.f32.mrb[0].mxu0
  %1302 = vmatprep.mubr.f32.mxu0 0.0
  %1303 = vmatmul.mubr.f32.gmra.mrb[0].mxu0 %v1223
  %v1304 = vpop.f32.mrb[0].mxu0
  %v1305 = vadd.f32 0.0, %v1304
  %v1306 = vpop.f32.mrb[0].mxu0
  %1307 = vmatprep.mubr.f32.mxu0 0.0
  %1308 = vmatmul.mubr.f32.gmra.mrb[0].mxu0 %v1226
  %v1309 = vpop.f32.mrb[0].mxu0
  %v1310 = vadd.f32 0.0, %v1309
  %v1311 = vpop.f32.mrb[0].mxu0
  %1312 = vdwg.mxu0
  %v1314 = vsel %vm465, %v1025, 0
  %v1317 = vsel %vm465, %v1026, 0
  %v1320 = vsel %vm465, %v1027, 0
  %v1323 = vsel %vm465, %v1028, 0
  %1325 = vmatprep.subr.mxu0 0.0
  %1326 = vmatpush1.msra.mxu0 %v1200
  %1327 = vmatprep.subr.mxu0 0.0
  %1328 = vmatpush1.msra.mxu0 %v1201
  %1329 = vmatprep.subr.mxu0 0.0
  %1330 = vmatpush1.msra.mxu0 %v1202
  %1331 = vmatprep.subr.mxu0 0.0
  %1332 = vmatpush1.msra.mxu0 %v1203
  %1333 = vmatprep.subr.mxu0 0.0
  %1334 = vmatpush1.msra.mxu0 %v1204
  %1335 = vmatprep.subr.mxu0 0.0
  %1336 = vmatpush1.msra.mxu0 %v1205
  %1337 = vmatprep.subr.mxu0 0.0
  %1338 = vmatpush1.msra.mxu0 %v1206
  %1339 = vmatprep.subr.mxu0 0.0
  %1340 = vmatpush1.msra.mxu0 %v1207
  %1341 = vmatprep.subr.mxu0 0.0
  %1342 = vmatpush1.msra.mxu0 0.0
  %1343 = vmatprep.subr.mxu0 0.0
  %1344 = vmatpush1.msra.mxu0 0.0
  %1345 = vmatprep.subr.mxu0 0.0
  %1346 = vmatpush1.msra.mxu0 0.0
  %1347 = vmatprep.subr.mxu0 0.0
  %1348 = vmatpush1.msra.mxu0 0.0
  %1349 = vmatprep.subr.mxu0 0.0
  %1350 = vmatpush1.msra.mxu0 0.0
  %1351 = vmatprep.subr.mxu0 0.0
  %1352 = vmatpush1.msra.mxu0 0.0
  %1353 = vmatprep.subr.mxu0 0.0
  %1354 = vmatpush1.msra.mxu0 0.0
  %1355 = vmatprep.subr.mxu0 0.0
  %1356 = vmatpush1.msra.mxu0 0.0
  %1357 = vmatprep.subr.mxu0 0.0
  %1358 = vmatpush1.msra.mxu0 0.0
  %1359 = vmatprep.subr.mxu0 0.0
  %1360 = vmatpush1.msra.mxu0 0.0
  %1361 = vmatprep.subr.mxu0 0.0
  %1362 = vmatpush1.msra.mxu0 0.0
  %1363 = vmatprep.subr.mxu0 0.0
  %1364 = vmatpush1.msra.mxu0 0.0
  %1365 = vmatprep.subr.mxu0 0.0
  %1366 = vmatpush1.msra.mxu0 0.0
  %1367 = vmatprep.subr.mxu0 0.0
  %1368 = vmatpush1.msra.mxu0 0.0
  %1369 = vmatprep.subr.mxu0 0.0
  %1370 = vmatpush1.msra.mxu0 0.0
  %1371 = vmatprep.subr.mxu0 0.0
  %1372 = vmatpush1.msra.mxu0 0.0
  %1373 = vmatprep.subr.mxu0 0.0
  %1374 = vmatpush1.msra.mxu0 0.0
  %1375 = vmatprep.subr.mxu0 0.0
  %1376 = vmatpush1.msra.mxu0 0.0
  %1377 = vmatprep.subr.mxu0 0.0
  %1378 = vmatpush1.msra.mxu0 0.0
  %1379 = vmatprep.subr.mxu0 0.0
  %1380 = vmatpush1.msra.mxu0 0.0
  %1381 = vmatprep.subr.mxu0 0.0
  %1382 = vmatpush1.msra.mxu0 0.0
  %1383 = vmatprep.subr.mxu0 0.0
  %1384 = vmatpush1.msra.mxu0 0.0
  %1385 = vmatprep.subr.mxu0 0.0
  %1386 = vmatpush1.msra.mxu0 0.0
  %1387 = vmatprep.subr.mxu0 0.0
  %1388 = vmatpush1.msra.mxu0 0.0
  %1389 = vmatprep.mubr.f32.mxu0 0.0
  %1390 = vmatmul.mubr.f32.gmra.mrb[0].mxu0 %v1314
  %v1391 = vpop.f32.mrb[0].mxu0
  %v1392 = vadd.f32 %v1295, %v1391
  %v1393 = vpop.f32.mrb[0].mxu0
  %1394 = vmatprep.mubr.f32.mxu0 0.0
  %1395 = vmatmul.mubr.f32.gmra.mrb[0].mxu0 %v1317
  %v1396 = vpop.f32.mrb[0].mxu0
  %v1397 = vadd.f32 %v1300, %v1396
  %v1398 = vpop.f32.mrb[0].mxu0
  %1399 = vmatprep.mubr.f32.mxu0 0.0
  %1400 = vmatmul.mubr.f32.gmra.mrb[0].mxu0 %v1320
  %v1401 = vpop.f32.mrb[0].mxu0
  %v1402 = vadd.f32 %v1305, %v1401
  %v1403 = vpop.f32.mrb[0].mxu0
  %1404 = vmatprep.mubr.f32.mxu0 0.0
  %1405 = vmatmul.mubr.f32.gmra.mrb[0].mxu0 %v1323
  %v1406 = vpop.f32.mrb[0].mxu0
  %v1407 = vadd.f32 %v1310, %v1406
  %v1408 = vpop.f32.mrb[0].mxu0
  %1409 = vdwg.mxu0
  %s1410 = scalar_lea.vmem %s2, 128
  %v1411 = vld [vmem:[%s1410] sm:$0xff]
  %v1412 = vld [vmem:[%s1410 + $0x8] sm:$0xff]
  %v1413 = vld [vmem:[%s1410 + $0x10] sm:$0xff]
  %v1414 = vld [vmem:[%s1410 + $0x18] sm:$0xff]
  %v1415 = vld [vmem:[%s1410 + $0x20] sm:$0xff]
  %v1416 = vld [vmem:[%s1410 + $0x28] sm:$0xff]
  %v1417 = vld [vmem:[%s1410 + $0x30] sm:$0xff]
  %v1418 = vld [vmem:[%s1410 + $0x38] sm:$0xff]
  %v1420 = vsel %vm465, %v1181, 0
  %v1423 = vsel %vm465, %v1186, 0
  %v1426 = vsel %vm465, %v1191, 0
  %v1429 = vsel %vm465, %v1196, 0
  %1431 = vmatprep.subr.mxu0 0.0
  %1432 = vmatpush1.msra.mxu0 %v1411
  %1433 = vmatprep.subr.mxu0 0.0
  %1434 = vmatpush1.msra.mxu0 %v1412
  %1435 = vmatprep.subr.mxu0 0.0
  %1436 = vmatpush1.msra.mxu0 %v1413
  %1437 = vmatprep.subr.mxu0 0.0
  %1438 = vmatpush1.msra.mxu0 %v1414
  %1439 = vmatprep.subr.mxu0 0.0
  %1440 = vmatpush1.msra.mxu0 %v1415
  %1441 = vmatprep.subr.mxu0 0.0
  %1442 = vmatpush1.msra.mxu0 %v1416
  %1443 = vmatprep.subr.mxu0 0.0
  %1444 = vmatpush1.msra.mxu0 %v1417
  %1445 = vmatprep.subr.mxu0 0.0
  %1446 = vmatpush1.msra.mxu0 %v1418
  %1447 = vmatprep.subr.mxu0 0.0
  %1448 = vmatpush1.msra.mxu0 0.0
  %1449 = vmatprep.subr.mxu0 0.0
  %1450 = vmatpush1.msra.mxu0 0.0
  %1451 = vmatprep.subr.mxu0 0.0
  %1452 = vmatpush1.msra.mxu0 0.0
  %1453 = vmatprep.subr.mxu0 0.0
  %1454 = vmatpush1.msra.mxu0 0.0
  %1455 = vmatprep.subr.mxu0 0.0
  %1456 = vmatpush1.msra.mxu0 0.0
  %1457 = vmatprep.subr.mxu0 0.0
  %1458 = vmatpush1.msra.mxu0 0.0
  %1459 = vmatprep.subr.mxu0 0.0
  %1460 = vmatpush1.msra.mxu0 0.0
  %1461 = vmatprep.subr.mxu0 0.0
  %1462 = vmatpush1.msra.mxu0 0.0
  %1463 = vmatprep.subr.mxu0 0.0
  %1464 = vmatpush1.msra.mxu0 0.0
  %1465 = vmatprep.subr.mxu0 0.0
  %1466 = vmatpush1.msra.mxu0 0.0
  %1467 = vmatprep.subr.mxu0 0.0
  %1468 = vmatpush1.msra.mxu0 0.0
  %1469 = vmatprep.subr.mxu0 0.0
  %1470 = vmatpush1.msra.mxu0 0.0
  %1471 = vmatprep.subr.mxu0 0.0
  %1472 = vmatpush1.msra.mxu0 0.0
  %1473 = vmatprep.subr.mxu0 0.0
  %1474 = vmatpush1.msra.mxu0 0.0
  %1475 = vmatprep.subr.mxu0 0.0
  %1476 = vmatpush1.msra.mxu0 0.0
  %1477 = vmatprep.subr.mxu0 0.0
  %1478 = vmatpush1.msra.mxu0 0.0
  %1479 = vmatprep.subr.mxu0 0.0
  %1480 = vmatpush1.msra.mxu0 0.0
  %1481 = vmatprep.subr.mxu0 0.0
  %1482 = vmatpush1.msra.mxu0 0.0
  %1483 = vmatprep.subr.mxu0 0.0
  %1484 = vmatpush1.msra.mxu0 0.0
  %1485 = vmatprep.subr.mxu0 0.0
  %1486 = vmatpush1.msra.mxu0 0.0
  %1487 = vmatprep.subr.mxu0 0.0
  %1488 = vmatpush1.msra.mxu0 0.0
  %1489 = vmatprep.subr.mxu0 0.0
  %1490 = vmatpush1.msra.mxu0 0.0
  %1491 = vmatprep.subr.mxu0 0.0
  %1492 = vmatpush1.msra.mxu0 0.0
  %1493 = vmatprep.subr.mxu0 0.0
  %1494 = vmatpush1.msra.mxu0 0.0
  %1495 = vmatprep.mubr.f32.mxu0 0.0
  %1496 = vmatmul.mubr.f32.gmra.mrb[0].mxu0 %v1420
  %v1497 = vpop.f32.mrb[0].mxu0
  %v1498 = vadd.f32 0.0, %v1497
  %v1499 = vpop.f32.mrb[0].mxu0
  %1500 = vmatprep.mubr.f32.mxu0 0.0
  %1501 = vmatmul.mubr.f32.gmra.mrb[0].mxu0 %v1423
  %v1502 = vpop.f32.mrb[0].mxu0
  %v1503 = vadd.f32 0.0, %v1502
  %v1504 = vpop.f32.mrb[0].mxu0
  %1505 = vmatprep.mubr.f32.mxu0 0.0
  %1506 = vmatmul.mubr.f32.gmra.mrb[0].mxu0 %v1426
  %v1507 = vpop.f32.mrb[0].mxu0
  %v1508 = vadd.f32 0.0, %v1507
  %v1509 = vpop.f32.mrb[0].mxu0
  %1510 = vmatprep.mubr.f32.mxu0 0.0
  %1511 = vmatmul.mubr.f32.gmra.mrb[0].mxu0 %v1429
  %v1512 = vpop.f32.mrb[0].mxu0
  %v1513 = vadd.f32 0.0, %v1512
  %v1514 = vpop.f32.mrb[0].mxu0
  %1515 = vdwg.mxu0
  %v1516 = vadd.f32 %v1392, %v1498
  %v1517 = vadd.f32 %v1397, %v1503
  %v1518 = vadd.f32 %v1402, %v1508
  %v1519 = vadd.f32 %v1407, %v1513
  %v1521 = vsel %vm465, %v1516, 0
  %v1524 = vsel %vm465, %v1517, 0
  %v1527 = vsel %vm465, %v1518, 0
  %v1530 = vsel %vm465, %v1519, 0
  %1532 = vmatprep.subr.mxu0 0.0
  %1533 = vmatpush1.msra.mxu0 %v241
  %1534 = vmatprep.subr.mxu0 0.0
  %1535 = vmatpush1.msra.mxu0 %v242
  %1536 = vmatprep.subr.mxu0 0.0
  %1537 = vmatpush1.msra.mxu0 %v243
  %1538 = vmatprep.subr.mxu0 0.0
  %1539 = vmatpush1.msra.mxu0 %v244
  %1540 = vmatprep.subr.mxu0 0.0
  %1541 = vmatpush1.msra.mxu0 %v245
  %1542 = vmatprep.subr.mxu0 0.0
  %1543 = vmatpush1.msra.mxu0 %v246
  %1544 = vmatprep.subr.mxu0 0.0
  %1545 = vmatpush1.msra.mxu0 %v247
  %1546 = vmatprep.subr.mxu0 0.0
  %1547 = vmatpush1.msra.mxu0 %v248
  %1548 = vmatprep.subr.mxu0 0.0
  %1549 = vmatpush1.msra.mxu0 0.0
  %1550 = vmatprep.subr.mxu0 0.0
  %1551 = vmatpush1.msra.mxu0 0.0
  %1552 = vmatprep.subr.mxu0 0.0
  %1553 = vmatpush1.msra.mxu0 0.0
  %1554 = vmatprep.subr.mxu0 0.0
  %1555 = vmatpush1.msra.mxu0 0.0
  %1556 = vmatprep.subr.mxu0 0.0
  %1557 = vmatpush1.msra.mxu0 0.0
  %1558 = vmatprep.subr.mxu0 0.0
  %1559 = vmatpush1.msra.mxu0 0.0
  %1560 = vmatprep.subr.mxu0 0.0
  %1561 = vmatpush1.msra.mxu0 0.0
  %1562 = vmatprep.subr.mxu0 0.0
  %1563 = vmatpush1.msra.mxu0 0.0
  %1564 = vmatprep.subr.mxu0 0.0
  %1565 = vmatpush1.msra.mxu0 0.0
  %1566 = vmatprep.subr.mxu0 0.0
  %1567 = vmatpush1.msra.mxu0 0.0
  %1568 = vmatprep.subr.mxu0 0.0
  %1569 = vmatpush1.msra.mxu0 0.0
  %1570 = vmatprep.subr.mxu0 0.0
  %1571 = vmatpush1.msra.mxu0 0.0
  %1572 = vmatprep.subr.mxu0 0.0
  %1573 = vmatpush1.msra.mxu0 0.0
  %1574 = vmatprep.subr.mxu0 0.0
  %1575 = vmatpush1.msra.mxu0 0.0
  %1576 = vmatprep.subr.mxu0 0.0
  %1577 = vmatpush1.msra.mxu0 0.0
  %1578 = vmatprep.subr.mxu0 0.0
  %1579 = vmatpush1.msra.mxu0 0.0
  %1580 = vmatprep.subr.mxu0 0.0
  %1581 = vmatpush1.msra.mxu0 0.0
  %1582 = vmatprep.subr.mxu0 0.0
  %1583 = vmatpush1.msra.mxu0 0.0
  %1584 = vmatprep.subr.mxu0 0.0
  %1585 = vmatpush1.msra.mxu0 0.0
  %1586 = vmatprep.subr.mxu0 0.0
  %1587 = vmatpush1.msra.mxu0 0.0
  %1588 = vmatprep.subr.mxu0 0.0
  %1589 = vmatpush1.msra.mxu0 0.0
  %1590 = vmatprep.subr.mxu0 0.0
  %1591 = vmatpush1.msra.mxu0 0.0
  %1592 = vmatprep.subr.mxu0 0.0
  %1593 = vmatpush1.msra.mxu0 0.0
  %1594 = vmatprep.subr.mxu0 0.0
  %1595 = vmatpush1.msra.mxu0 0.0
  %1596 = vmatprep.mubr.f32.mxu0 0.0
  %1597 = vmatmul.mubr.f32.gmra.mrb[0].mxu0 %v1521
  %v1598 = vpop.f32.mrb[0].mxu0
  %v1599 = vadd.f32 0.0, %v1598
  %v1600 = vpop.f32.mrb[0].mxu0
  %1601 = vmatprep.mubr.f32.mxu0 0.0
  %1602 = vmatmul.mubr.f32.gmra.mrb[0].mxu0 %v1524
  %v1603 = vpop.f32.mrb[0].mxu0
  %v1604 = vadd.f32 0.0, %v1603
  %v1605 = vpop.f32.mrb[0].mxu0
  %1606 = vmatprep.mubr.f32.mxu0 0.0
  %1607 = vmatmul.mubr.f32.gmra.mrb[0].mxu0 %v1527
  %v1608 = vpop.f32.mrb[0].mxu0
  %v1609 = vadd.f32 0.0, %v1608
  %v1610 = vpop.f32.mrb[0].mxu0
  %1611 = vmatprep.mubr.f32.mxu0 0.0
  %1612 = vmatmul.mubr.f32.gmra.mrb[0].mxu0 %v1530
  %v1613 = vpop.f32.mrb[0].mxu0
  %v1614 = vadd.f32 0.0, %v1613
  %v1615 = vpop.f32.mrb[0].mxu0
  %1616 = vdwg.mxu0
  %v1617 = vsel %vm465, %v1599, 0.0
  %v1618 = vsel %vm465, %v1604, 0.0
  %v1619 = vadd.f32 %v1617, %v1618
  %v1620 = vsel %vm465, %v1609, 0.0
  %v1621 = vadd.f32 %v1619, %v1620
  %v1622 = vsel %vm465, %v1614, 0.0
  %v1623 = vadd.f32 %v1621, %v1622
  %v1624 = vrot.slane %v1623, 4
  %v1625 = vadd.f32 %v1623, %v1624
  %v1626 = vrot.slane %v1625, 2
  %v1627 = vadd.f32 %v1625, %v1626
  %v1628 = vrot.slane %v1627, 1
  %v1629 = vadd.f32 %v1627, %v1628
  %v1630 = vmul.f32 %v1516, %v1516
  %v1631 = vmul.f32 %v1517, %v1517
  %v1632 = vmul.f32 %v1518, %v1518
  %v1633 = vmul.f32 %v1519, %v1519
  %v1635 = vsel %vm465, %v1630, 0
  %v1638 = vsel %vm465, %v1631, 0
  %v1641 = vsel %vm465, %v1632, 0
  %v1644 = vsel %vm465, %v1633, 0
  %1646 = vmatprep.subr.mxu0 0.0
  %1647 = vmatpush1.msra.mxu0 %v241
  %1648 = vmatprep.subr.mxu0 0.0
  %1649 = vmatpush1.msra.mxu0 %v242
  %1650 = vmatprep.subr.mxu0 0.0
  %1651 = vmatpush1.msra.mxu0 %v243
  %1652 = vmatprep.subr.mxu0 0.0
  %1653 = vmatpush1.msra.mxu0 %v244
  %1654 = vmatprep.subr.mxu0 0.0
  %1655 = vmatpush1.msra.mxu0 %v245
  %1656 = vmatprep.subr.mxu0 0.0
  %1657 = vmatpush1.msra.mxu0 %v246
  %1658 = vmatprep.subr.mxu0 0.0
  %1659 = vmatpush1.msra.mxu0 %v247
  %1660 = vmatprep.subr.mxu0 0.0
  %1661 = vmatpush1.msra.mxu0 %v248
  %1662 = vmatprep.subr.mxu0 0.0
  %1663 = vmatpush1.msra.mxu0 0.0
  %1664 = vmatprep.subr.mxu0 0.0
  %1665 = vmatpush1.msra.mxu0 0.0
  %1666 = vmatprep.subr.mxu0 0.0
  %1667 = vmatpush1.msra.mxu0 0.0
  %1668 = vmatprep.subr.mxu0 0.0
  %1669 = vmatpush1.msra.mxu0 0.0
  %1670 = vmatprep.subr.mxu0 0.0
  %1671 = vmatpush1.msra.mxu0 0.0
  %1672 = vmatprep.subr.mxu0 0.0
  %1673 = vmatpush1.msra.mxu0 0.0
  %1674 = vmatprep.subr.mxu0 0.0
  %1675 = vmatpush1.msra.mxu0 0.0
  %1676 = vmatprep.subr.mxu0 0.0
  %1677 = vmatpush1.msra.mxu0 0.0
  %1678 = vmatprep.subr.mxu0 0.0
  %1679 = vmatpush1.msra.mxu0 0.0
  %1680 = vmatprep.subr.mxu0 0.0
  %1681 = vmatpush1.msra.mxu0 0.0
  %1682 = vmatprep.subr.mxu0 0.0
  %1683 = vmatpush1.msra.mxu0 0.0
  %1684 = vmatprep.subr.mxu0 0.0
  %1685 = vmatpush1.msra.mxu0 0.0
  %1686 = vmatprep.subr.mxu0 0.0
  %1687 = vmatpush1.msra.mxu0 0.0
  %1688 = vmatprep.subr.mxu0 0.0
  %1689 = vmatpush1.msra.mxu0 0.0
  %1690 = vmatprep.subr.mxu0 0.0
  %1691 = vmatpush1.msra.mxu0 0.0
  %1692 = vmatprep.subr.mxu0 0.0
  %1693 = vmatpush1.msra.mxu0 0.0
  %1694 = vmatprep.subr.mxu0 0.0
  %1695 = vmatpush1.msra.mxu0 0.0
  %1696 = vmatprep.subr.mxu0 0.0
  %1697 = vmatpush1.msra.mxu0 0.0
  %1698 = vmatprep.subr.mxu0 0.0
  %1699 = vmatpush1.msra.mxu0 0.0
  %1700 = vmatprep.subr.mxu0 0.0
  %1701 = vmatpush1.msra.mxu0 0.0
  %1702 = vmatprep.subr.mxu0 0.0
  %1703 = vmatpush1.msra.mxu0 0.0
  %1704 = vmatprep.subr.mxu0 0.0
  %1705 = vmatpush1.msra.mxu0 0.0
  %1706 = vmatprep.subr.mxu0 0.0
  %1707 = vmatpush1.msra.mxu0 0.0
  %1708 = vmatprep.subr.mxu0 0.0
  %1709 = vmatpush1.msra.mxu0 0.0
  %1710 = vmatprep.mubr.f32.mxu0 0.0
  %1711 = vmatmul.mubr.f32.gmra.mrb[0].mxu0 %v1635
  %v1712 = vpop.f32.mrb[0].mxu0
  %v1713 = vadd.f32 0.0, %v1712
  %v1714 = vpop.f32.mrb[0].mxu0
  %1715 = vmatprep.mubr.f32.mxu0 0.0
  %1716 = vmatmul.mubr.f32.gmra.mrb[0].mxu0 %v1638
  %v1717 = vpop.f32.mrb[0].mxu0
  %v1718 = vadd.f32 0.0, %v1717
  %v1719 = vpop.f32.mrb[0].mxu0
  %1720 = vmatprep.mubr.f32.mxu0 0.0
  %1721 = vmatmul.mubr.f32.gmra.mrb[0].mxu0 %v1641
  %v1722 = vpop.f32.mrb[0].mxu0
  %v1723 = vadd.f32 0.0, %v1722
  %v1724 = vpop.f32.mrb[0].mxu0
  %1725 = vmatprep.mubr.f32.mxu0 0.0
  %1726 = vmatmul.mubr.f32.gmra.mrb[0].mxu0 %v1644
  %v1727 = vpop.f32.mrb[0].mxu0
  %v1728 = vadd.f32 0.0, %v1727
  %v1729 = vpop.f32.mrb[0].mxu0
  %1730 = vdwg.mxu0
  %v1731 = vsel %vm465, %v1713, 0.0
  %v1732 = vsel %vm465, %v1718, 0.0
  %v1733 = vadd.f32 %v1731, %v1732
  %v1734 = vsel %vm465, %v1723, 0.0
  %v1735 = vadd.f32 %v1733, %v1734
  %v1736 = vsel %vm465, %v1728, 0.0
  %v1737 = vadd.f32 %v1735, %v1736
  %v1738 = vrot.slane %v1737, 4
  %v1739 = vadd.f32 %v1737, %v1738
  %v1740 = vrot.slane %v1739, 2
  %v1741 = vadd.f32 %v1739, %v1740
  %v1742 = vrot.slane %v1741, 1
  %v1743 = vadd.f32 %v1741, %v1742
  %v1744 = vmul.f32 %v1629, 0.001953125
  %v1745 = vmul.f32 %v1743, 0.001953125
  %v1746 = vmul.f32 %v1744, %v1744
  %v1747 = vsub.f32 %v1745, %v1746
  %v1748 = vld [vmem:[%s5] sm:$0x1]
  %v1749 = vadd.f32 %v1747, 1e-05
  %v1750 = vrsqrt.pop %v1749
  %v1751 = vmul.f32 %v1748, %v1750
  %v1752 = vld [vmem:[%s6] sm:$0x1]
  %v1753 = vmul.f32 %v1744, %v1751
  %v1754 = vsub.f32 %v1752, %v1753
  %v1756 = vlaneseq
  %v1757 = vshrl.u32 %v1756, 7
  %v1758 = vsub.s32 0, %v1757
  %v1759 = vrot.slane %v1751, %v1758
  %v1761 = vmul.f32 %v1516, %v1759
  %v1762 = vmul.f32 %v1517, %v1759
  %v1763 = vmul.f32 %v1518, %v1759
  %v1764 = vmul.f32 %v1519, %v1759
  %v1766 = vlaneseq
  %v1767 = vshrl.u32 %v1766, 7
  %v1768 = vsub.s32 0, %v1767
  %v1769 = vrot.slane %v1754, %v1768
  %v1771 = vadd.f32 %v1761, %v1769
  %v1772 = vadd.f32 %v1762, %v1769
  %v1773 = vadd.f32 %v1763, %v1769
  %v1774 = vadd.f32 %v1764, %v1769
  %v1775 = vadd.f32 %v1771, %v249
  %v1776 = vadd.f32 %v1772, %v250
  %v1777 = vadd.f32 %v1773, %v251
  %v1778 = vadd.f32 %v1774, %v252
  %v1779 = vmax.f32 %v1775, 0.0
  %v1780 = vmax.f32 %v1776, 0.0
  %v1781 = vmax.f32 %v1777, 0.0
  %v1782 = vmax.f32 %v1778, 0.0
  %1783 = vst.msk [vmem:[%s7] sm:$0xff] %vm465, %v1779
  %1784 = vst.msk [vmem:[%s7 + $0x8] sm:$0xff] %vm465, %v1780
  %1785 = vst.msk [vmem:[%s7 + $0x10] sm:$0xff] %vm465, %v1781
  %1786 = vst.msk [vmem:[%s7 + $0x18] sm:$0xff] %vm465, %v1782
  // Predicated region
  $region30: #{block_forward.1} parent=0 // pred_check
    _
  $region31: #{block_forward.1} parent=0 // pred_check_branch
    %1788 = sbr.rel (0) target = $region33
  $region32: #{block_forward.1} parent=0 // pred_region
    _
  $region33: #{block_forward.1} parent=0 // pred_fallthru
    _
  // Predicated region
  $region34: #{block_forward.1} parent=0 // pred_check
    _
  $region35: #{block_forward.1} parent=0 // pred_check_branch
    %1790 = sbr.rel (0) target = $region37
  $region36: #{block_forward.1} parent=0 // pred_region
    _
  $region37: #{block_forward.1} parent=0 // pred_fallthru
    _

</llo_original>
